<compile_context>
chip_gen: v7x
topology: tpu7x:2x2x1
jax: 0.10.0
libtpu: 0.0.40
codegen_flags: <defaults>
</compile_context>

<pallas_src>
import jax
import jax.numpy as jnp
from jax.experimental import pallas as pl
from jax.experimental.pallas import tpu as pltpu

# ---------------- model hyper-parameters (small, consistent with the module) ----
VOCAB = 64        # vocab_size
EMB = 32          # word_embedding_size
HID = 32          # hidden_size
LAYERS = 2        # num_rnn_layers
SEQ = 8           # sequence length
BATCH = 2         # batch size
G4 = 4 * HID      # 128  (gate width)
OUT_ROWS = 8      # sublane-padded packed output rows


def _gates_to_hc(gates, c_prev):
    """PyTorch LSTM cell update. gates:(B,4H) pre-activation, (i,f,g,o) order."""
    sg = jax.nn.sigmoid(gates)            # full 128-lane activation (i,f,o lanes used)
    th = jnp.tanh(gates)                  # full 128-lane activation (g lanes used)
    i = sg[:, 0 * HID:1 * HID]
    f = sg[:, 1 * HID:2 * HID]
    g = th[:, 2 * HID:3 * HID]
    o = sg[:, 3 * HID:4 * HID]
    c_new = f * c_prev + i * g
    h_new = o * jnp.tanh(c_new)
    return h_new, c_new


def encoder_kernel(tok_ref,        # SMEM (SEQ*BATCH,) int32   [scalar prefetch]
                   table_ref,      # (VOCAB, EMB)
                   wih0t_ref,      # (EMB, 4H)
                   b0_ref,         # (1, 4H)
                   wstep_ref,      # (2H, 8H) fused step weight
                   b1_ref,         # (1, 4H)
                   out_ref,        # (8, 4H) packed [h0|h1|c0|c1] in rows 0:BATCH
                   tproj_ref):     # VMEM scratch (VOCAB, 4H)
    # Project the entire (tiny) embedding table through W_ih0^T once; fold b0.
    tproj_ref[...] = (
        jnp.dot(table_ref[...], wih0t_ref[...], preferred_element_type=jnp.float32)
        + b0_ref[...])

    wstep = wstep_ref[...]
    b1 = b1_ref[...]

    # Zero initial state (PyTorch default when no hx is passed).
    r0 = jnp.zeros((BATCH, G4), jnp.float32)   # h0_{t-1} @ W_hh0^T  (zero at t=0)
    h0 = jnp.zeros((BATCH, HID), jnp.float32)
    c0 = jnp.zeros((BATCH, HID), jnp.float32)
    h1 = jnp.zeros((BATCH, HID), jnp.float32)
    c1 = jnp.zeros((BATCH, HID), jnp.float32)

    # Fully unrolled serial recurrence: ONE MXU push per timestep.
    for t in range(SEQ):
        # Gathered + projected layer-0 input for this step (b0 already folded).
        # Dynamic row reads are independent of the recurrence -> schedulable early.
        rows = [tproj_ref[pl.ds(tok_ref[t * BATCH + b], 1), :] for b in range(BATCH)]
        xp = jnp.concatenate(rows, axis=0)                      # (B, 4H)

        # ----- layer 0: gates = x_proj[t] + r0 (recurrent term from prev step)
        g0 = xp + r0
        h0, c0 = _gates_to_hc(g0, c0)

        # inter-layer dropout: eval-mode -> identity

        # ----- fused step matmul: cols 0:4H -> r0 for step t+1,
        #                          cols 4H:8H -> layer-1 gates at step t.
        lhs = jnp.concatenate([h0, h1], axis=-1)                # (B, 2H)
        big = jnp.dot(lhs, wstep, preferred_element_type=jnp.float32)  # (B, 8H)
        r0 = big[:, :G4]
        g1 = big[:, G4:] + b1
        h1, c1 = _gates_to_hc(g1, c1)

    # Single lane-dense (8,128) store: rows 0:BATCH hold [h0 | h1 | c0 | c1].
    payload = jnp.concatenate([h0, h1, c0, c1], axis=-1)        # (B, 4H)
    out_ref[...] = jnp.concatenate(
        [payload, jnp.zeros((OUT_ROWS - BATCH, G4), jnp.float32)], axis=0)


@jax.jit
def encoder_forward(x_tokens, params):
    """x_tokens: (SEQ, BATCH) int32 -> (h, c), each (LAYERS, BATCH, HID) f32."""
    tok = x_tokens.reshape(SEQ * BATCH).astype(jnp.int32)       # row = t*BATCH + b

    table = params["embedding"]                                  # (VOCAB, EMB)
    # Pre-transpose weights -> (in_features, out_features); fold biases.
    wih0t = params["w_ih0"].T                                    # (EMB, 4H)
    b0 = (params["b_ih0"] + params["b_hh0"]).reshape(1, G4)
    b1 = (params["b_ih1"] + params["b_hh1"]).reshape(1, G4)
    # Fused step weight (2H, 8H): cols 0:4H = [W_hh0^T ; 0], cols 4H:8H = [W_ih1^T ; W_hh1^T].
    wstep = jnp.concatenate(
        [jnp.concatenate([params["w_hh0"].T, params["w_ih1"].T], axis=1),
         jnp.concatenate([jnp.zeros((HID, G4), jnp.float32), params["w_hh1"].T], axis=1)],
        axis=0)                                                  # (2H, 8H)

    full2 = lambda i, tok_ref: (0, 0)

    packed = pl.pallas_call(
        encoder_kernel,
        out_shape=jax.ShapeDtypeStruct((OUT_ROWS, G4), jnp.float32),
        grid_spec=pltpu.PrefetchScalarGridSpec(
            num_scalar_prefetch=1,
            grid=(1,),
            in_specs=[
                pl.BlockSpec((VOCAB, EMB), full2),      # embedding table
                pl.BlockSpec((EMB, G4), full2),         # W_ih0^T
                pl.BlockSpec((1, G4), full2),           # b0
                pl.BlockSpec((2 * HID, 2 * G4), full2), # fused step weight
                pl.BlockSpec((1, G4), full2),           # b1
            ],
            out_specs=pl.BlockSpec((OUT_ROWS, G4), full2),
            scratch_shapes=[pltpu.VMEM((VOCAB, G4), jnp.float32)],
        ),
    )(tok, table, wih0t, b0, wstep, b1)

    hc = packed[:BATCH, :]                                       # (B, 4H)
    h = jnp.stack([hc[:, 0 * HID:1 * HID], hc[:, 1 * HID:2 * HID]], axis=0)
    c = jnp.stack([hc[:, 2 * HID:3 * HID], hc[:, 3 * HID:4 * HID]], axis=0)
    return h, c


def reference_forward(x_tokens, params):
    """Pure-JAX reference matching PyTorch eval-mode Encoder.forward."""
    emb = jnp.take(params["embedding"], x_tokens, axis=0)
    b0 = params["b_ih0"] + params["b_hh0"]
    b1 = params["b_ih1"] + params["b_hh1"]
    h = [jnp.zeros((BATCH, HID), jnp.float32) for _ in range(LAYERS)]
    c = [jnp.zeros((BATCH, HID), jnp.float32) for _ in range(LAYERS)]
    for t in range(SEQ):
        x_t = emb[t]
        g0 = x_t @ params["w_ih0"].T + h[0] @ params["w_hh0"].T + b0[None, :]
        h[0], c[0] = _gates_to_hc(g0, c[0])
        g1 = h[0] @ params["w_ih1"].T + h[1] @ params["w_hh1"].T + b1[None, :]
        h[1], c[1] = _gates_to_hc(g1, c[1])
    return jnp.stack(h, axis=0), jnp.stack(c, axis=0)


def init_params(key):
    ks = jax.random.split(key, 9)
    s = 1.0 / jnp.sqrt(HID)
    u = lambda k, shape: jax.random.uniform(k, shape, jnp.float32, -s, s)
    return {
        "embedding": jax.random.normal(ks[0], (VOCAB, EMB), jnp.float32),
        "w_ih0": u(ks[1], (4 * HID, EMB)),
        "w_hh0": u(ks[2], (4 * HID, HID)),
        "b_ih0": u(ks[3], (4 * HID,)),
        "b_hh0": u(ks[4], (4 * HID,)),
        "w_ih1": u(ks[5], (4 * HID, HID)),
        "w_hh1": u(ks[6], (4 * HID, HID)),
        "b_ih1": u(ks[7], (4 * HID,)),
        "b_hh1": u(ks[8], (4 * HID,)),
    }


if __name__ == "__main__":
    key = jax.random.PRNGKey(0)
    k_tok, k_p = jax.random.split(key, 2)

    x_tokens = jax.random.randint(k_tok, (SEQ, BATCH), 0, VOCAB, dtype=jnp.int32)
    params = init_params(k_p)

    h_out, c_out = encoder_forward(x_tokens, params)
    jax.block_until_ready((h_out, c_out))

    # correctness check against pure-JAX reference (f32 throughout)
    ref_h, ref_c = reference_forward(x_tokens, params)
    assert h_out.shape == (LAYERS, BATCH, HID)
    assert c_out.shape == (LAYERS, BATCH, HID)
    assert jnp.allclose(h_out, ref_h, atol=1e-4, rtol=1e-4)
    assert jnp.allclose(c_out, ref_c, atol=1e-4, rtol=1e-4)

    print("KERNEL_OK")
</pallas_src>

<mosaic_0001>
module attributes {stable_mosaic.version = 11 : i64} {
  func.func @encoder_kernel(%arg0: i32, %arg1: memref<16xi32, #tpu.memory_space<smem>>, %arg2: memref<64x32xf32, #tpu.memory_space<vmem>>, %arg3: memref<32x128xf32, #tpu.memory_space<vmem>>, %arg4: memref<1x128xf32, #tpu.memory_space<vmem>>, %arg5: memref<64x256xf32, #tpu.memory_space<vmem>>, %arg6: memref<1x128xf32, #tpu.memory_space<vmem>>, %arg7: memref<8x128xf32, #tpu.memory_space<vmem>>, %arg8: memref<64x128xf32, #tpu.memory_space<vmem>>) attributes {dimension_semantics = [#tpu.dimension_semantics<arbitrary>], iteration_bounds = array<i64: 1>, scalar_prefetch = 1 : i64, scratch_operands = 1 : i64, tpu.core_type = #tpu.core_type<tc>, window_params = [{pipeline_mode = #tpu.pipeline_mode<synchronous>, transform_indices = @transform_0, window_bounds = array<i64: 64, 32>}, {pipeline_mode = #tpu.pipeline_mode<synchronous>, transform_indices = @transform_1, window_bounds = array<i64: 32, 128>}, {pipeline_mode = #tpu.pipeline_mode<synchronous>, transform_indices = @transform_2, window_bounds = array<i64: 1, 128>}, {pipeline_mode = #tpu.pipeline_mode<synchronous>, transform_indices = @transform_3, window_bounds = array<i64: 64, 256>}, {pipeline_mode = #tpu.pipeline_mode<synchronous>, transform_indices = @transform_4, window_bounds = array<i64: 1, 128>}, {pipeline_mode = #tpu.pipeline_mode<synchronous>, transform_indices = @transform_5, window_bounds = array<i64: 8, 128>}]} {
    %c0 = arith.constant 0 : index
    %c0_0 = arith.constant 0 : index
    %0 = vector.load %arg2[%c0, %c0_0] : memref<64x32xf32, #tpu.memory_space<vmem>>, vector<64x32xf32>
    %c0_1 = arith.constant 0 : index
    %c0_2 = arith.constant 0 : index
    %1 = vector.load %arg3[%c0_1, %c0_2] : memref<32x128xf32, #tpu.memory_space<vmem>>, vector<32x128xf32>
    %cst = arith.constant dense<0.000000e+00> : vector<64x128xf32>
    %2 = tpu.matmul %0, %1, %cst {dimension_numbers = #tpu.dot_dimension_numbers<[1], [0], [0], [1], [0, 0, 1, 1], [], []>} : vector<64x32xf32>, vector<32x128xf32>, vector<64x128xf32> -> vector<64x128xf32>
    %c0_3 = arith.constant 0 : index
    %c0_4 = arith.constant 0 : index
    %3 = vector.load %arg4[%c0_3, %c0_4] : memref<1x128xf32, #tpu.memory_space<vmem>>, vector<1x128xf32>
    %4 = vector.broadcast %3 : vector<1x128xf32> to vector<64x128xf32>
    %5 = arith.addf %2, %4 : vector<64x128xf32>
    %c0_5 = arith.constant 0 : index
    %c0_6 = arith.constant 0 : index
    %6 = vector.load %arg8[%c0_5, %c0_6] : memref<64x128xf32, #tpu.memory_space<vmem>>, vector<64x128xf32>
    tpu.vector_store %arg8[%c0_5, %c0_6], %5 {strides = array<i32>} : memref<64x128xf32, #tpu.memory_space<vmem>>, vector<64x128xf32>,
    %c0_7 = arith.constant 0 : index
    %c0_8 = arith.constant 0 : index
    %7 = vector.load %arg5[%c0_7, %c0_8] : memref<64x256xf32, #tpu.memory_space<vmem>>, vector<64x256xf32>
    %c0_9 = arith.constant 0 : index
    %c0_10 = arith.constant 0 : index
    %8 = vector.load %arg6[%c0_9, %c0_10] : memref<1x128xf32, #tpu.memory_space<vmem>>, vector<1x128xf32>
    %cst_11 = arith.constant 0.000000e+00 : f32
    %9 = vector.broadcast %cst_11 : f32 to vector<2x128xf32>
    %cst_12 = arith.constant 0.000000e+00 : f32
    %10 = vector.broadcast %cst_12 : f32 to vector<2x32xf32>
    %cst_13 = arith.constant 0.000000e+00 : f32
    %11 = vector.broadcast %cst_13 : f32 to vector<2x32xf32>
    %cst_14 = arith.constant 0.000000e+00 : f32
    %12 = vector.broadcast %cst_14 : f32 to vector<2x32xf32>
    %c0_15 = arith.constant 0 : index
    %13 = memref.load %arg1[%c0_15] : memref<16xi32, #tpu.memory_space<smem>>
    %14 = arith.index_cast %13 : i32 to index
    %c0_16 = arith.constant 0 : index
    %15 = vector.load %arg8[%14, %c0_16] : memref<64x128xf32, #tpu.memory_space<vmem>>, vector<1x128xf32>
    %c1 = arith.constant 1 : index
    %16 = memref.load %arg1[%c1] : memref<16xi32, #tpu.memory_space<smem>>
    %17 = arith.index_cast %16 : i32 to index
    %c0_17 = arith.constant 0 : index
    %18 = vector.load %arg8[%17, %c0_17] : memref<64x128xf32, #tpu.memory_space<vmem>>, vector<1x128xf32>
    %19 = tpu.concatenate %15, %18 in 0 : vector<1x128xf32>, vector<1x128xf32> -> vector<2x128xf32>
    %20 = arith.addf %19, %9 : vector<2x128xf32>
    %21 = arith.negf %20 : vector<2x128xf32>
    %22 = math.exp %21 : vector<2x128xf32>
    %cst_18 = arith.constant 1.000000e+00 : f32
    %23 = vector.broadcast %cst_18 : f32 to vector<2x128xf32>
    %24 = arith.addf %23, %22 : vector<2x128xf32>
    %25 = arith.divf %23, %24 : vector<2x128xf32>
    %26 = math.tanh %20 : vector<2x128xf32>
    %27 = vector.extract_strided_slice %25 {offsets = [0, 0], sizes = [2, 32], strides = [1, 1]} : vector<2x128xf32> to vector<2x32xf32>
    %28 = vector.extract_strided_slice %25 {offsets = [0, 32], sizes = [2, 32], strides = [1, 1]} : vector<2x128xf32> to vector<2x32xf32>
    %29 = vector.extract_strided_slice %26 {offsets = [0, 64], sizes = [2, 32], strides = [1, 1]} : vector<2x128xf32> to vector<2x32xf32>
    %30 = vector.extract_strided_slice %25 {offsets = [0, 96], sizes = [2, 32], strides = [1, 1]} : vector<2x128xf32> to vector<2x32xf32>
    %31 = arith.mulf %28, %10 : vector<2x32xf32>
    %32 = arith.mulf %27, %29 : vector<2x32xf32>
    %33 = arith.addf %31, %32 : vector<2x32xf32>
    %34 = math.tanh %33 : vector<2x32xf32>
    %35 = arith.mulf %30, %34 : vector<2x32xf32>
    %36 = tpu.concatenate %35, %11 in 1 : vector<2x32xf32>, vector<2x32xf32> -> vector<2x64xf32>
    %cst_19 = arith.constant dense<0.000000e+00> : vector<2x256xf32>
    %37 = tpu.matmul %36, %7, %cst_19 {dimension_numbers = #tpu.dot_dimension_numbers<[1], [0], [0], [1], [0, 0, 1, 1], [], []>} : vector<2x64xf32>, vector<64x256xf32>, vector<2x256xf32> -> vector<2x256xf32>
    %38 = vector.extract_strided_slice %37 {offsets = [0, 0], sizes = [2, 128], strides = [1, 1]} : vector<2x256xf32> to vector<2x128xf32>
    %39 = vector.extract_strided_slice %37 {offsets = [0, 128], sizes = [2, 128], strides = [1, 1]} : vector<2x256xf32> to vector<2x128xf32>
    %40 = vector.broadcast %8 : vector<1x128xf32> to vector<2x128xf32>
    %41 = arith.addf %39, %40 : vector<2x128xf32>
    %42 = arith.negf %41 : vector<2x128xf32>
    %43 = math.exp %42 : vector<2x128xf32>
    %cst_20 = arith.constant 1.000000e+00 : f32
    %44 = vector.broadcast %cst_20 : f32 to vector<2x128xf32>
    %45 = arith.addf %44, %43 : vector<2x128xf32>
    %46 = arith.divf %44, %45 : vector<2x128xf32>
    %47 = math.tanh %41 : vector<2x128xf32>
    %48 = vector.extract_strided_slice %46 {offsets = [0, 0], sizes = [2, 32], strides = [1, 1]} : vector<2x128xf32> to vector<2x32xf32>
    %49 = vector.extract_strided_slice %46 {offsets = [0, 32], sizes = [2, 32], strides = [1, 1]} : vector<2x128xf32> to vector<2x32xf32>
    %50 = vector.extract_strided_slice %47 {offsets = [0, 64], sizes = [2, 32], strides = [1, 1]} : vector<2x128xf32> to vector<2x32xf32>
    %51 = vector.extract_strided_slice %46 {offsets = [0, 96], sizes = [2, 32], strides = [1, 1]} : vector<2x128xf32> to vector<2x32xf32>
    %52 = arith.mulf %49, %12 : vector<2x32xf32>
    %53 = arith.mulf %48, %50 : vector<2x32xf32>
    %54 = arith.addf %52, %53 : vector<2x32xf32>
    %55 = math.tanh %54 : vector<2x32xf32>
    %56 = arith.mulf %51, %55 : vector<2x32xf32>
    %c2 = arith.constant 2 : index
    %57 = memref.load %arg1[%c2] : memref<16xi32, #tpu.memory_space<smem>>
    %58 = arith.index_cast %57 : i32 to index
    %c0_21 = arith.constant 0 : index
    %59 = vector.load %arg8[%58, %c0_21] : memref<64x128xf32, #tpu.memory_space<vmem>>, vector<1x128xf32>
    %c3 = arith.constant 3 : index
    %60 = memref.load %arg1[%c3] : memref<16xi32, #tpu.memory_space<smem>>
    %61 = arith.index_cast %60 : i32 to index
    %c0_22 = arith.constant 0 : index
    %62 = vector.load %arg8[%61, %c0_22] : memref<64x128xf32, #tpu.memory_space<vmem>>, vector<1x128xf32>
    %63 = tpu.concatenate %59, %62 in 0 : vector<1x128xf32>, vector<1x128xf32> -> vector<2x128xf32>
    %64 = arith.addf %63, %38 : vector<2x128xf32>
    %65 = arith.negf %64 : vector<2x128xf32>
    %66 = math.exp %65 : vector<2x128xf32>
    %cst_23 = arith.constant 1.000000e+00 : f32
    %67 = vector.broadcast %cst_23 : f32 to vector<2x128xf32>
    %68 = arith.addf %67, %66 : vector<2x128xf32>
    %69 = arith.divf %67, %68 : vector<2x128xf32>
    %70 = math.tanh %64 : vector<2x128xf32>
    %71 = vector.extract_strided_slice %69 {offsets = [0, 0], sizes = [2, 32], strides = [1, 1]} : vector<2x128xf32> to vector<2x32xf32>
    %72 = vector.extract_strided_slice %69 {offsets = [0, 32], sizes = [2, 32], strides = [1, 1]} : vector<2x128xf32> to vector<2x32xf32>
    %73 = vector.extract_strided_slice %70 {offsets = [0, 64], sizes = [2, 32], strides = [1, 1]} : vector<2x128xf32> to vector<2x32xf32>
    %74 = vector.extract_strided_slice %69 {offsets = [0, 96], sizes = [2, 32], strides = [1, 1]} : vector<2x128xf32> to vector<2x32xf32>
    %75 = arith.mulf %72, %33 : vector<2x32xf32>
    %76 = arith.mulf %71, %73 : vector<2x32xf32>
    %77 = arith.addf %75, %76 : vector<2x32xf32>
    %78 = math.tanh %77 : vector<2x32xf32>
    %79 = arith.mulf %74, %78 : vector<2x32xf32>
    %80 = tpu.concatenate %79, %56 in 1 : vector<2x32xf32>, vector<2x32xf32> -> vector<2x64xf32>
    %cst_24 = arith.constant dense<0.000000e+00> : vector<2x256xf32>
    %81 = tpu.matmul %80, %7, %cst_24 {dimension_numbers = #tpu.dot_dimension_numbers<[1], [0], [0], [1], [0, 0, 1, 1], [], []>} : vector<2x64xf32>, vector<64x256xf32>, vector<2x256xf32> -> vector<2x256xf32>
    %82 = vector.extract_strided_slice %81 {offsets = [0, 0], sizes = [2, 128], strides = [1, 1]} : vector<2x256xf32> to vector<2x128xf32>
    %83 = vector.extract_strided_slice %81 {offsets = [0, 128], sizes = [2, 128], strides = [1, 1]} : vector<2x256xf32> to vector<2x128xf32>
    %84 = vector.broadcast %8 : vector<1x128xf32> to vector<2x128xf32>
    %85 = arith.addf %83, %84 : vector<2x128xf32>
    %86 = arith.negf %85 : vector<2x128xf32>
    %87 = math.exp %86 : vector<2x128xf32>
    %cst_25 = arith.constant 1.000000e+00 : f32
    %88 = vector.broadcast %cst_25 : f32 to vector<2x128xf32>
    %89 = arith.addf %88, %87 : vector<2x128xf32>
    %90 = arith.divf %88, %89 : vector<2x128xf32>
    %91 = math.tanh %85 : vector<2x128xf32>
    %92 = vector.extract_strided_slice %90 {offsets = [0, 0], sizes = [2, 32], strides = [1, 1]} : vector<2x128xf32> to vector<2x32xf32>
    %93 = vector.extract_strided_slice %90 {offsets = [0, 32], sizes = [2, 32], strides = [1, 1]} : vector<2x128xf32> to vector<2x32xf32>
    %94 = vector.extract_strided_slice %91 {offsets = [0, 64], sizes = [2, 32], strides = [1, 1]} : vector<2x128xf32> to vector<2x32xf32>
    %95 = vector.extract_strided_slice %90 {offsets = [0, 96], sizes = [2, 32], strides = [1, 1]} : vector<2x128xf32> to vector<2x32xf32>
    %96 = arith.mulf %93, %54 : vector<2x32xf32>
    %97 = arith.mulf %92, %94 : vector<2x32xf32>
    %98 = arith.addf %96, %97 : vector<2x32xf32>
    %99 = math.tanh %98 : vector<2x32xf32>
    %100 = arith.mulf %95, %99 : vector<2x32xf32>
    %c4 = arith.constant 4 : index
    %101 = memref.load %arg1[%c4] : memref<16xi32, #tpu.memory_space<smem>>
    %102 = arith.index_cast %101 : i32 to index
    %c0_26 = arith.constant 0 : index
    %103 = vector.load %arg8[%102, %c0_26] : memref<64x128xf32, #tpu.memory_space<vmem>>, vector<1x128xf32>
    %c5 = arith.constant 5 : index
    %104 = memref.load %arg1[%c5] : memref<16xi32, #tpu.memory_space<smem>>
    %105 = arith.index_cast %104 : i32 to index
    %c0_27 = arith.constant 0 : index
    %106 = vector.load %arg8[%105, %c0_27] : memref<64x128xf32, #tpu.memory_space<vmem>>, vector<1x128xf32>
    %107 = tpu.concatenate %103, %106 in 0 : vector<1x128xf32>, vector<1x128xf32> -> vector<2x128xf32>
    %108 = arith.addf %107, %82 : vector<2x128xf32>
    %109 = arith.negf %108 : vector<2x128xf32>
    %110 = math.exp %109 : vector<2x128xf32>
    %cst_28 = arith.constant 1.000000e+00 : f32
    %111 = vector.broadcast %cst_28 : f32 to vector<2x128xf32>
    %112 = arith.addf %111, %110 : vector<2x128xf32>
    %113 = arith.divf %111, %112 : vector<2x128xf32>
    %114 = math.tanh %108 : vector<2x128xf32>
    %115 = vector.extract_strided_slice %113 {offsets = [0, 0], sizes = [2, 32], strides = [1, 1]} : vector<2x128xf32> to vector<2x32xf32>
    %116 = vector.extract_strided_slice %113 {offsets = [0, 32], sizes = [2, 32], strides = [1, 1]} : vector<2x128xf32> to vector<2x32xf32>
    %117 = vector.extract_strided_slice %114 {offsets = [0, 64], sizes = [2, 32], strides = [1, 1]} : vector<2x128xf32> to vector<2x32xf32>
    %118 = vector.extract_strided_slice %113 {offsets = [0, 96], sizes = [2, 32], strides = [1, 1]} : vector<2x128xf32> to vector<2x32xf32>
    %119 = arith.mulf %116, %77 : vector<2x32xf32>
    %120 = arith.mulf %115, %117 : vector<2x32xf32>
    %121 = arith.addf %119, %120 : vector<2x32xf32>
    %122 = math.tanh %121 : vector<2x32xf32>
    %123 = arith.mulf %118, %122 : vector<2x32xf32>
    %124 = tpu.concatenate %123, %100 in 1 : vector<2x32xf32>, vector<2x32xf32> -> vector<2x64xf32>
    %cst_29 = arith.constant dense<0.000000e+00> : vector<2x256xf32>
    %125 = tpu.matmul %124, %7, %cst_29 {dimension_numbers = #tpu.dot_dimension_numbers<[1], [0], [0], [1], [0, 0, 1, 1], [], []>} : vector<2x64xf32>, vector<64x256xf32>, vector<2x256xf32> -> vector<2x256xf32>
    %126 = vector.extract_strided_slice %125 {offsets = [0, 0], sizes = [2, 128], strides = [1, 1]} : vector<2x256xf32> to vector<2x128xf32>
    %127 = vector.extract_strided_slice %125 {offsets = [0, 128], sizes = [2, 128], strides = [1, 1]} : vector<2x256xf32> to vector<2x128xf32>
    %128 = vector.broadcast %8 : vector<1x128xf32> to vector<2x128xf32>
    %129 = arith.addf %127, %128 : vector<2x128xf32>
    %130 = arith.negf %129 : vector<2x128xf32>
    %131 = math.exp %130 : vector<2x128xf32>
    %cst_30 = arith.constant 1.000000e+00 : f32
    %132 = vector.broadcast %cst_30 : f32 to vector<2x128xf32>
    %133 = arith.addf %132, %131 : vector<2x128xf32>
    %134 = arith.divf %132, %133 : vector<2x128xf32>
    %135 = math.tanh %129 : vector<2x128xf32>
    %136 = vector.extract_strided_slice %134 {offsets = [0, 0], sizes = [2, 32], strides = [1, 1]} : vector<2x128xf32> to vector<2x32xf32>
    %137 = vector.extract_strided_slice %134 {offsets = [0, 32], sizes = [2, 32], strides = [1, 1]} : vector<2x128xf32> to vector<2x32xf32>
    %138 = vector.extract_strided_slice %135 {offsets = [0, 64], sizes = [2, 32], strides = [1, 1]} : vector<2x128xf32> to vector<2x32xf32>
    %139 = vector.extract_strided_slice %134 {offsets = [0, 96], sizes = [2, 32], strides = [1, 1]} : vector<2x128xf32> to vector<2x32xf32>
    %140 = arith.mulf %137, %98 : vector<2x32xf32>
    %141 = arith.mulf %136, %138 : vector<2x32xf32>
    %142 = arith.addf %140, %141 : vector<2x32xf32>
    %143 = math.tanh %142 : vector<2x32xf32>
    %144 = arith.mulf %139, %143 : vector<2x32xf32>
    %c6 = arith.constant 6 : index
    %145 = memref.load %arg1[%c6] : memref<16xi32, #tpu.memory_space<smem>>
    %146 = arith.index_cast %145 : i32 to index
    %c0_31 = arith.constant 0 : index
    %147 = vector.load %arg8[%146, %c0_31] : memref<64x128xf32, #tpu.memory_space<vmem>>, vector<1x128xf32>
    %c7 = arith.constant 7 : index
    %148 = memref.load %arg1[%c7] : memref<16xi32, #tpu.memory_space<smem>>
    %149 = arith.index_cast %148 : i32 to index
    %c0_32 = arith.constant 0 : index
    %150 = vector.load %arg8[%149, %c0_32] : memref<64x128xf32, #tpu.memory_space<vmem>>, vector<1x128xf32>
    %151 = tpu.concatenate %147, %150 in 0 : vector<1x128xf32>, vector<1x128xf32> -> vector<2x128xf32>
    %152 = arith.addf %151, %126 : vector<2x128xf32>
    %153 = arith.negf %152 : vector<2x128xf32>
    %154 = math.exp %153 : vector<2x128xf32>
    %cst_33 = arith.constant 1.000000e+00 : f32
    %155 = vector.broadcast %cst_33 : f32 to vector<2x128xf32>
    %156 = arith.addf %155, %154 : vector<2x128xf32>
    %157 = arith.divf %155, %156 : vector<2x128xf32>
    %158 = math.tanh %152 : vector<2x128xf32>
    %159 = vector.extract_strided_slice %157 {offsets = [0, 0], sizes = [2, 32], strides = [1, 1]} : vector<2x128xf32> to vector<2x32xf32>
    %160 = vector.extract_strided_slice %157 {offsets = [0, 32], sizes = [2, 32], strides = [1, 1]} : vector<2x128xf32> to vector<2x32xf32>
    %161 = vector.extract_strided_slice %158 {offsets = [0, 64], sizes = [2, 32], strides = [1, 1]} : vector<2x128xf32> to vector<2x32xf32>
    %162 = vector.extract_strided_slice %157 {offsets = [0, 96], sizes = [2, 32], strides = [1, 1]} : vector<2x128xf32> to vector<2x32xf32>
    %163 = arith.mulf %160, %121 : vector<2x32xf32>
    %164 = arith.mulf %159, %161 : vector<2x32xf32>
    %165 = arith.addf %163, %164 : vector<2x32xf32>
    %166 = math.tanh %165 : vector<2x32xf32>
    %167 = arith.mulf %162, %166 : vector<2x32xf32>
    %168 = tpu.concatenate %167, %144 in 1 : vector<2x32xf32>, vector<2x32xf32> -> vector<2x64xf32>
    %cst_34 = arith.constant dense<0.000000e+00> : vector<2x256xf32>
    %169 = tpu.matmul %168, %7, %cst_34 {dimension_numbers = #tpu.dot_dimension_numbers<[1], [0], [0], [1], [0, 0, 1, 1], [], []>} : vector<2x64xf32>, vector<64x256xf32>, vector<2x256xf32> -> vector<2x256xf32>
    %170 = vector.extract_strided_slice %169 {offsets = [0, 0], sizes = [2, 128], strides = [1, 1]} : vector<2x256xf32> to vector<2x128xf32>
    %171 = vector.extract_strided_slice %169 {offsets = [0, 128], sizes = [2, 128], strides = [1, 1]} : vector<2x256xf32> to vector<2x128xf32>
    %172 = vector.broadcast %8 : vector<1x128xf32> to vector<2x128xf32>
    %173 = arith.addf %171, %172 : vector<2x128xf32>
    %174 = arith.negf %173 : vector<2x128xf32>
    %175 = math.exp %174 : vector<2x128xf32>
    %cst_35 = arith.constant 1.000000e+00 : f32
    %176 = vector.broadcast %cst_35 : f32 to vector<2x128xf32>
    %177 = arith.addf %176, %175 : vector<2x128xf32>
    %178 = arith.divf %176, %177 : vector<2x128xf32>
    %179 = math.tanh %173 : vector<2x128xf32>
    %180 = vector.extract_strided_slice %178 {offsets = [0, 0], sizes = [2, 32], strides = [1, 1]} : vector<2x128xf32> to vector<2x32xf32>
    %181 = vector.extract_strided_slice %178 {offsets = [0, 32], sizes = [2, 32], strides = [1, 1]} : vector<2x128xf32> to vector<2x32xf32>
    %182 = vector.extract_strided_slice %179 {offsets = [0, 64], sizes = [2, 32], strides = [1, 1]} : vector<2x128xf32> to vector<2x32xf32>
    %183 = vector.extract_strided_slice %178 {offsets = [0, 96], sizes = [2, 32], strides = [1, 1]} : vector<2x128xf32> to vector<2x32xf32>
    %184 = arith.mulf %181, %142 : vector<2x32xf32>
    %185 = arith.mulf %180, %182 : vector<2x32xf32>
    %186 = arith.addf %184, %185 : vector<2x32xf32>
    %187 = math.tanh %186 : vector<2x32xf32>
    %188 = arith.mulf %183, %187 : vector<2x32xf32>
    %c8 = arith.constant 8 : index
    %189 = memref.load %arg1[%c8] : memref<16xi32, #tpu.memory_space<smem>>
    %190 = arith.index_cast %189 : i32 to index
    %c0_36 = arith.constant 0 : index
    %191 = vector.load %arg8[%190, %c0_36] : memref<64x128xf32, #tpu.memory_space<vmem>>, vector<1x128xf32>
    %c9 = arith.constant 9 : index
    %192 = memref.load %arg1[%c9] : memref<16xi32, #tpu.memory_space<smem>>
    %193 = arith.index_cast %192 : i32 to index
    %c0_37 = arith.constant 0 : index
    %194 = vector.load %arg8[%193, %c0_37] : memref<64x128xf32, #tpu.memory_space<vmem>>, vector<1x128xf32>
    %195 = tpu.concatenate %191, %194 in 0 : vector<1x128xf32>, vector<1x128xf32> -> vector<2x128xf32>
    %196 = arith.addf %195, %170 : vector<2x128xf32>
    %197 = arith.negf %196 : vector<2x128xf32>
    %198 = math.exp %197 : vector<2x128xf32>
    %cst_38 = arith.constant 1.000000e+00 : f32
    %199 = vector.broadcast %cst_38 : f32 to vector<2x128xf32>
    %200 = arith.addf %199, %198 : vector<2x128xf32>
    %201 = arith.divf %199, %200 : vector<2x128xf32>
    %202 = math.tanh %196 : vector<2x128xf32>
    %203 = vector.extract_strided_slice %201 {offsets = [0, 0], sizes = [2, 32], strides = [1, 1]} : vector<2x128xf32> to vector<2x32xf32>
    %204 = vector.extract_strided_slice %201 {offsets = [0, 32], sizes = [2, 32], strides = [1, 1]} : vector<2x128xf32> to vector<2x32xf32>
    %205 = vector.extract_strided_slice %202 {offsets = [0, 64], sizes = [2, 32], strides = [1, 1]} : vector<2x128xf32> to vector<2x32xf32>
    %206 = vector.extract_strided_slice %201 {offsets = [0, 96], sizes = [2, 32], strides = [1, 1]} : vector<2x128xf32> to vector<2x32xf32>
    %207 = arith.mulf %204, %165 : vector<2x32xf32>
    %208 = arith.mulf %203, %205 : vector<2x32xf32>
    %209 = arith.addf %207, %208 : vector<2x32xf32>
    %210 = math.tanh %209 : vector<2x32xf32>
    %211 = arith.mulf %206, %210 : vector<2x32xf32>
    %212 = tpu.concatenate %211, %188 in 1 : vector<2x32xf32>, vector<2x32xf32> -> vector<2x64xf32>
    %cst_39 = arith.constant dense<0.000000e+00> : vector<2x256xf32>
    %213 = tpu.matmul %212, %7, %cst_39 {dimension_numbers = #tpu.dot_dimension_numbers<[1], [0], [0], [1], [0, 0, 1, 1], [], []>} : vector<2x64xf32>, vector<64x256xf32>, vector<2x256xf32> -> vector<2x256xf32>
    %214 = vector.extract_strided_slice %213 {offsets = [0, 0], sizes = [2, 128], strides = [1, 1]} : vector<2x256xf32> to vector<2x128xf32>
    %215 = vector.extract_strided_slice %213 {offsets = [0, 128], sizes = [2, 128], strides = [1, 1]} : vector<2x256xf32> to vector<2x128xf32>
    %216 = vector.broadcast %8 : vector<1x128xf32> to vector<2x128xf32>
    %217 = arith.addf %215, %216 : vector<2x128xf32>
    %218 = arith.negf %217 : vector<2x128xf32>
    %219 = math.exp %218 : vector<2x128xf32>
    %cst_40 = arith.constant 1.000000e+00 : f32
    %220 = vector.broadcast %cst_40 : f32 to vector<2x128xf32>
    %221 = arith.addf %220, %219 : vector<2x128xf32>
    %222 = arith.divf %220, %221 : vector<2x128xf32>
    %223 = math.tanh %217 : vector<2x128xf32>
    %224 = vector.extract_strided_slice %222 {offsets = [0, 0], sizes = [2, 32], strides = [1, 1]} : vector<2x128xf32> to vector<2x32xf32>
    %225 = vector.extract_strided_slice %222 {offsets = [0, 32], sizes = [2, 32], strides = [1, 1]} : vector<2x128xf32> to vector<2x32xf32>
    %226 = vector.extract_strided_slice %223 {offsets = [0, 64], sizes = [2, 32], strides = [1, 1]} : vector<2x128xf32> to vector<2x32xf32>
    %227 = vector.extract_strided_slice %222 {offsets = [0, 96], sizes = [2, 32], strides = [1, 1]} : vector<2x128xf32> to vector<2x32xf32>
    %228 = arith.mulf %225, %186 : vector<2x32xf32>
    %229 = arith.mulf %224, %226 : vector<2x32xf32>
    %230 = arith.addf %228, %229 : vector<2x32xf32>
    %231 = math.tanh %230 : vector<2x32xf32>
    %232 = arith.mulf %227, %231 : vector<2x32xf32>
    %c10 = arith.constant 10 : index
    %233 = memref.load %arg1[%c10] : memref<16xi32, #tpu.memory_space<smem>>
    %234 = arith.index_cast %233 : i32 to index
    %c0_41 = arith.constant 0 : index
    %235 = vector.load %arg8[%234, %c0_41] : memref<64x128xf32, #tpu.memory_space<vmem>>, vector<1x128xf32>
    %c11 = arith.constant 11 : index
    %236 = memref.load %arg1[%c11] : memref<16xi32, #tpu.memory_space<smem>>
    %237 = arith.index_cast %236 : i32 to index
    %c0_42 = arith.constant 0 : index
    %238 = vector.load %arg8[%237, %c0_42] : memref<64x128xf32, #tpu.memory_space<vmem>>, vector<1x128xf32>
    %239 = tpu.concatenate %235, %238 in 0 : vector<1x128xf32>, vector<1x128xf32> -> vector<2x128xf32>
    %240 = arith.addf %239, %214 : vector<2x128xf32>
    %241 = arith.negf %240 : vector<2x128xf32>
    %242 = math.exp %241 : vector<2x128xf32>
    %cst_43 = arith.constant 1.000000e+00 : f32
    %243 = vector.broadcast %cst_43 : f32 to vector<2x128xf32>
    %244 = arith.addf %243, %242 : vector<2x128xf32>
    %245 = arith.divf %243, %244 : vector<2x128xf32>
    %246 = math.tanh %240 : vector<2x128xf32>
    %247 = vector.extract_strided_slice %245 {offsets = [0, 0], sizes = [2, 32], strides = [1, 1]} : vector<2x128xf32> to vector<2x32xf32>
    %248 = vector.extract_strided_slice %245 {offsets = [0, 32], sizes = [2, 32], strides = [1, 1]} : vector<2x128xf32> to vector<2x32xf32>
    %249 = vector.extract_strided_slice %246 {offsets = [0, 64], sizes = [2, 32], strides = [1, 1]} : vector<2x128xf32> to vector<2x32xf32>
    %250 = vector.extract_strided_slice %245 {offsets = [0, 96], sizes = [2, 32], strides = [1, 1]} : vector<2x128xf32> to vector<2x32xf32>
    %251 = arith.mulf %248, %209 : vector<2x32xf32>
    %252 = arith.mulf %247, %249 : vector<2x32xf32>
    %253 = arith.addf %251, %252 : vector<2x32xf32>
    %254 = math.tanh %253 : vector<2x32xf32>
    %255 = arith.mulf %250, %254 : vector<2x32xf32>
    %256 = tpu.concatenate %255, %232 in 1 : vector<2x32xf32>, vector<2x32xf32> -> vector<2x64xf32>
    %cst_44 = arith.constant dense<0.000000e+00> : vector<2x256xf32>
    %257 = tpu.matmul %256, %7, %cst_44 {dimension_numbers = #tpu.dot_dimension_numbers<[1], [0], [0], [1], [0, 0, 1, 1], [], []>} : vector<2x64xf32>, vector<64x256xf32>, vector<2x256xf32> -> vector<2x256xf32>
    %258 = vector.extract_strided_slice %257 {offsets = [0, 0], sizes = [2, 128], strides = [1, 1]} : vector<2x256xf32> to vector<2x128xf32>
    %259 = vector.extract_strided_slice %257 {offsets = [0, 128], sizes = [2, 128], strides = [1, 1]} : vector<2x256xf32> to vector<2x128xf32>
    %260 = vector.broadcast %8 : vector<1x128xf32> to vector<2x128xf32>
    %261 = arith.addf %259, %260 : vector<2x128xf32>
    %262 = arith.negf %261 : vector<2x128xf32>
    %263 = math.exp %262 : vector<2x128xf32>
    %cst_45 = arith.constant 1.000000e+00 : f32
    %264 = vector.broadcast %cst_45 : f32 to vector<2x128xf32>
    %265 = arith.addf %264, %263 : vector<2x128xf32>
    %266 = arith.divf %264, %265 : vector<2x128xf32>
    %267 = math.tanh %261 : vector<2x128xf32>
    %268 = vector.extract_strided_slice %266 {offsets = [0, 0], sizes = [2, 32], strides = [1, 1]} : vector<2x128xf32> to vector<2x32xf32>
    %269 = vector.extract_strided_slice %266 {offsets = [0, 32], sizes = [2, 32], strides = [1, 1]} : vector<2x128xf32> to vector<2x32xf32>
    %270 = vector.extract_strided_slice %267 {offsets = [0, 64], sizes = [2, 32], strides = [1, 1]} : vector<2x128xf32> to vector<2x32xf32>
    %271 = vector.extract_strided_slice %266 {offsets = [0, 96], sizes = [2, 32], strides = [1, 1]} : vector<2x128xf32> to vector<2x32xf32>
    %272 = arith.mulf %269, %230 : vector<2x32xf32>
    %273 = arith.mulf %268, %270 : vector<2x32xf32>
    %274 = arith.addf %272, %273 : vector<2x32xf32>
    %275 = math.tanh %274 : vector<2x32xf32>
    %276 = arith.mulf %271, %275 : vector<2x32xf32>
    %c12 = arith.constant 12 : index
    %277 = memref.load %arg1[%c12] : memref<16xi32, #tpu.memory_space<smem>>
    %278 = arith.index_cast %277 : i32 to index
    %c0_46 = arith.constant 0 : index
    %279 = vector.load %arg8[%278, %c0_46] : memref<64x128xf32, #tpu.memory_space<vmem>>, vector<1x128xf32>
    %c13 = arith.constant 13 : index
    %280 = memref.load %arg1[%c13] : memref<16xi32, #tpu.memory_space<smem>>
    %281 = arith.index_cast %280 : i32 to index
    %c0_47 = arith.constant 0 : index
    %282 = vector.load %arg8[%281, %c0_47] : memref<64x128xf32, #tpu.memory_space<vmem>>, vector<1x128xf32>
    %283 = tpu.concatenate %279, %282 in 0 : vector<1x128xf32>, vector<1x128xf32> -> vector<2x128xf32>
    %284 = arith.addf %283, %258 : vector<2x128xf32>
    %285 = arith.negf %284 : vector<2x128xf32>
    %286 = math.exp %285 : vector<2x128xf32>
    %cst_48 = arith.constant 1.000000e+00 : f32
    %287 = vector.broadcast %cst_48 : f32 to vector<2x128xf32>
    %288 = arith.addf %287, %286 : vector<2x128xf32>
    %289 = arith.divf %287, %288 : vector<2x128xf32>
    %290 = math.tanh %284 : vector<2x128xf32>
    %291 = vector.extract_strided_slice %289 {offsets = [0, 0], sizes = [2, 32], strides = [1, 1]} : vector<2x128xf32> to vector<2x32xf32>
    %292 = vector.extract_strided_slice %289 {offsets = [0, 32], sizes = [2, 32], strides = [1, 1]} : vector<2x128xf32> to vector<2x32xf32>
    %293 = vector.extract_strided_slice %290 {offsets = [0, 64], sizes = [2, 32], strides = [1, 1]} : vector<2x128xf32> to vector<2x32xf32>
    %294 = vector.extract_strided_slice %289 {offsets = [0, 96], sizes = [2, 32], strides = [1, 1]} : vector<2x128xf32> to vector<2x32xf32>
    %295 = arith.mulf %292, %253 : vector<2x32xf32>
    %296 = arith.mulf %291, %293 : vector<2x32xf32>
    %297 = arith.addf %295, %296 : vector<2x32xf32>
    %298 = math.tanh %297 : vector<2x32xf32>
    %299 = arith.mulf %294, %298 : vector<2x32xf32>
    %300 = tpu.concatenate %299, %276 in 1 : vector<2x32xf32>, vector<2x32xf32> -> vector<2x64xf32>
    %cst_49 = arith.constant dense<0.000000e+00> : vector<2x256xf32>
    %301 = tpu.matmul %300, %7, %cst_49 {dimension_numbers = #tpu.dot_dimension_numbers<[1], [0], [0], [1], [0, 0, 1, 1], [], []>} : vector<2x64xf32>, vector<64x256xf32>, vector<2x256xf32> -> vector<2x256xf32>
    %302 = vector.extract_strided_slice %301 {offsets = [0, 0], sizes = [2, 128], strides = [1, 1]} : vector<2x256xf32> to vector<2x128xf32>
    %303 = vector.extract_strided_slice %301 {offsets = [0, 128], sizes = [2, 128], strides = [1, 1]} : vector<2x256xf32> to vector<2x128xf32>
    %304 = vector.broadcast %8 : vector<1x128xf32> to vector<2x128xf32>
    %305 = arith.addf %303, %304 : vector<2x128xf32>
    %306 = arith.negf %305 : vector<2x128xf32>
    %307 = math.exp %306 : vector<2x128xf32>
    %cst_50 = arith.constant 1.000000e+00 : f32
    %308 = vector.broadcast %cst_50 : f32 to vector<2x128xf32>
    %309 = arith.addf %308, %307 : vector<2x128xf32>
    %310 = arith.divf %308, %309 : vector<2x128xf32>
    %311 = math.tanh %305 : vector<2x128xf32>
    %312 = vector.extract_strided_slice %310 {offsets = [0, 0], sizes = [2, 32], strides = [1, 1]} : vector<2x128xf32> to vector<2x32xf32>
    %313 = vector.extract_strided_slice %310 {offsets = [0, 32], sizes = [2, 32], strides = [1, 1]} : vector<2x128xf32> to vector<2x32xf32>
    %314 = vector.extract_strided_slice %311 {offsets = [0, 64], sizes = [2, 32], strides = [1, 1]} : vector<2x128xf32> to vector<2x32xf32>
    %315 = vector.extract_strided_slice %310 {offsets = [0, 96], sizes = [2, 32], strides = [1, 1]} : vector<2x128xf32> to vector<2x32xf32>
    %316 = arith.mulf %313, %274 : vector<2x32xf32>
    %317 = arith.mulf %312, %314 : vector<2x32xf32>
    %318 = arith.addf %316, %317 : vector<2x32xf32>
    %319 = math.tanh %318 : vector<2x32xf32>
    %320 = arith.mulf %315, %319 : vector<2x32xf32>
    %c14 = arith.constant 14 : index
    %321 = memref.load %arg1[%c14] : memref<16xi32, #tpu.memory_space<smem>>
    %322 = arith.index_cast %321 : i32 to index
    %c0_51 = arith.constant 0 : index
    %323 = vector.load %arg8[%322, %c0_51] : memref<64x128xf32, #tpu.memory_space<vmem>>, vector<1x128xf32>
    %c15 = arith.constant 15 : index
    %324 = memref.load %arg1[%c15] : memref<16xi32, #tpu.memory_space<smem>>
    %325 = arith.index_cast %324 : i32 to index
    %c0_52 = arith.constant 0 : index
    %326 = vector.load %arg8[%325, %c0_52] : memref<64x128xf32, #tpu.memory_space<vmem>>, vector<1x128xf32>
    %327 = tpu.concatenate %323, %326 in 0 : vector<1x128xf32>, vector<1x128xf32> -> vector<2x128xf32>
    %328 = arith.addf %327, %302 : vector<2x128xf32>
    %329 = arith.negf %328 : vector<2x128xf32>
    %330 = math.exp %329 : vector<2x128xf32>
    %cst_53 = arith.constant 1.000000e+00 : f32
    %331 = vector.broadcast %cst_53 : f32 to vector<2x128xf32>
    %332 = arith.addf %331, %330 : vector<2x128xf32>
    %333 = arith.divf %331, %332 : vector<2x128xf32>
    %334 = math.tanh %328 : vector<2x128xf32>
    %335 = vector.extract_strided_slice %333 {offsets = [0, 0], sizes = [2, 32], strides = [1, 1]} : vector<2x128xf32> to vector<2x32xf32>
    %336 = vector.extract_strided_slice %333 {offsets = [0, 32], sizes = [2, 32], strides = [1, 1]} : vector<2x128xf32> to vector<2x32xf32>
    %337 = vector.extract_strided_slice %334 {offsets = [0, 64], sizes = [2, 32], strides = [1, 1]} : vector<2x128xf32> to vector<2x32xf32>
    %338 = vector.extract_strided_slice %333 {offsets = [0, 96], sizes = [2, 32], strides = [1, 1]} : vector<2x128xf32> to vector<2x32xf32>
    %339 = arith.mulf %336, %297 : vector<2x32xf32>
    %340 = arith.mulf %335, %337 : vector<2x32xf32>
    %341 = arith.addf %339, %340 : vector<2x32xf32>
    %342 = math.tanh %341 : vector<2x32xf32>
    %343 = arith.mulf %338, %342 : vector<2x32xf32>
    %344 = tpu.concatenate %343, %320 in 1 : vector<2x32xf32>, vector<2x32xf32> -> vector<2x64xf32>
    %cst_54 = arith.constant dense<0.000000e+00> : vector<2x256xf32>
    %345 = tpu.matmul %344, %7, %cst_54 {dimension_numbers = #tpu.dot_dimension_numbers<[1], [0], [0], [1], [0, 0, 1, 1], [], []>} : vector<2x64xf32>, vector<64x256xf32>, vector<2x256xf32> -> vector<2x256xf32>
    %346 = vector.extract_strided_slice %345 {offsets = [0, 128], sizes = [2, 128], strides = [1, 1]} : vector<2x256xf32> to vector<2x128xf32>
    %347 = vector.broadcast %8 : vector<1x128xf32> to vector<2x128xf32>
    %348 = arith.addf %346, %347 : vector<2x128xf32>
    %349 = arith.negf %348 : vector<2x128xf32>
    %350 = math.exp %349 : vector<2x128xf32>
    %cst_55 = arith.constant 1.000000e+00 : f32
    %351 = vector.broadcast %cst_55 : f32 to vector<2x128xf32>
    %352 = arith.addf %351, %350 : vector<2x128xf32>
    %353 = arith.divf %351, %352 : vector<2x128xf32>
    %354 = math.tanh %348 : vector<2x128xf32>
    %355 = vector.extract_strided_slice %353 {offsets = [0, 0], sizes = [2, 32], strides = [1, 1]} : vector<2x128xf32> to vector<2x32xf32>
    %356 = vector.extract_strided_slice %353 {offsets = [0, 32], sizes = [2, 32], strides = [1, 1]} : vector<2x128xf32> to vector<2x32xf32>
    %357 = vector.extract_strided_slice %354 {offsets = [0, 64], sizes = [2, 32], strides = [1, 1]} : vector<2x128xf32> to vector<2x32xf32>
    %358 = vector.extract_strided_slice %353 {offsets = [0, 96], sizes = [2, 32], strides = [1, 1]} : vector<2x128xf32> to vector<2x32xf32>
    %359 = arith.mulf %356, %318 : vector<2x32xf32>
    %360 = arith.mulf %355, %357 : vector<2x32xf32>
    %361 = arith.addf %359, %360 : vector<2x32xf32>
    %362 = math.tanh %361 : vector<2x32xf32>
    %363 = arith.mulf %358, %362 : vector<2x32xf32>
    %364 = tpu.concatenate %343, %363, %341, %361 in 1 : vector<2x32xf32>, vector<2x32xf32>, vector<2x32xf32>, vector<2x32xf32> -> vector<2x128xf32>
    %cst_56 = arith.constant 0.000000e+00 : f32
    %365 = vector.broadcast %cst_56 : f32 to vector<6x128xf32>
    %366 = tpu.concatenate %364, %365 in 0 : vector<2x128xf32>, vector<6x128xf32> -> vector<8x128xf32>
    %c0_57 = arith.constant 0 : index
    %c0_58 = arith.constant 0 : index
    %367 = vector.load %arg7[%c0_57, %c0_58] : memref<8x128xf32, #tpu.memory_space<vmem>>, vector<8x128xf32>
    tpu.vector_store %arg7[%c0_57, %c0_58], %366 {strides = array<i32>} : memref<8x128xf32, #tpu.memory_space<vmem>>, vector<8x128xf32>,
    return
  }
  func.func @transform_0(%arg0: i32, %arg1: memref<16xi32, #tpu.memory_space<smem>>) -> (i32, i32) {
    %c0_i32 = arith.constant 0 : i32
    %c0_i32_0 = arith.constant 0 : i32
    %c0_i32_1 = arith.constant 0 : i32
    return %c0_i32, %c0_i32_0 : i32, i32
  }
  func.func @transform_1(%arg0: i32, %arg1: memref<16xi32, #tpu.memory_space<smem>>) -> (i32, i32) {
    %c0_i32 = arith.constant 0 : i32
    %c0_i32_0 = arith.constant 0 : i32
    %c0_i32_1 = arith.constant 0 : i32
    return %c0_i32, %c0_i32_0 : i32, i32
  }
  func.func @transform_2(%arg0: i32, %arg1: memref<16xi32, #tpu.memory_space<smem>>) -> (i32, i32) {
    %c0_i32 = arith.constant 0 : i32
    %c0_i32_0 = arith.constant 0 : i32
    %c0_i32_1 = arith.constant 0 : i32
    return %c0_i32, %c0_i32_0 : i32, i32
  }
  func.func @transform_3(%arg0: i32, %arg1: memref<16xi32, #tpu.memory_space<smem>>) -> (i32, i32) {
    %c0_i32 = arith.constant 0 : i32
    %c0_i32_0 = arith.constant 0 : i32
    %c0_i32_1 = arith.constant 0 : i32
    return %c0_i32, %c0_i32_0 : i32, i32
  }
  func.func @transform_4(%arg0: i32, %arg1: memref<16xi32, #tpu.memory_space<smem>>) -> (i32, i32) {
    %c0_i32 = arith.constant 0 : i32
    %c0_i32_0 = arith.constant 0 : i32
    %c0_i32_1 = arith.constant 0 : i32
    return %c0_i32, %c0_i32_0 : i32, i32
  }
  func.func @transform_5(%arg0: i32, %arg1: memref<16xi32, #tpu.memory_space<smem>>) -> (i32, i32) {
    %c0_i32 = arith.constant 0 : i32
    %c0_i32_0 = arith.constant 0 : i32
    %c0_i32_1 = arith.constant 0 : i32
    return %c0_i32, %c0_i32_0 : i32, i32
  }
}

</mosaic_0001>

<llo_original>
// kernel: encoder_forward.1
$region0: #{encoder_forward.1}
  #allocation0 [shape = 'u32[]', space=smem, size = 0x4, offset = 0x4, fixed_abs, tag = 'smem constant byte address 0x4 - core index']
  #allocation1 [shape = 'u32[144,128]{1,0:T(1,128)}', space=vmem, size = 0x12000, scoped, tag = 'internal scratch']
  #allocation2 [shape = 'f32[64,128]{1,0:T(8,128)}', space=vmem, size = 0x8000, scoped, tag = 'scratch operand']
  #allocation3 [shape = 's32[1]{0}', space=sflag, size = 0x4, scoped, tag = 'scoped memory for encoder_forward.1']
  #allocation4 [shape = 'u8[512]{0}', space=smem, size = 0x200, scoped, tag = 'prefetched SMEM operand 0']
  %s0 = inlined_call_operand.vmem [shape: s32[16], index: 0, kind: input, shape index: {}]
  %s1 = inlined_call_operand.vmem [shape: f32[64,32], index: 1, kind: input, shape index: {}]
  %s2 = inlined_call_operand.vmem [shape: f32[32,128], index: 2, kind: input, shape index: {}]
  %s3 = inlined_call_operand.vmem [shape: f32[1,128], index: 3, kind: input, shape index: {}]
  %s4 = inlined_call_operand.vmem [shape: f32[64,256], index: 4, kind: input, shape index: {}]
  %s5 = inlined_call_operand.vmem [shape: f32[1,128], index: 5, kind: input, shape index: {}]
  %s6 = inlined_call_operand.vmem [shape: f32[8,128], index: 6, kind: output, shape index: {}]
  %s7 = sld [smem:[#allocation0]]
  $region30: #{encoder_forward.1} parent=0
    _
  %s9 = ssub.s32 1, %s7
  %s10 = scalar_select 0, %s9, %s7
  %s11 = sshll.u32 %s0, 4
  %s12 = int_to_ptr.vmem [resolvable:$true] %s11
  %14 = dma.vmem_to_smem %s12, 16, [#allocation4], [#allocation3]
  %15 = dma.done [#allocation3], 16
  %16 = sfence
  // Predicated region
  $region2: #{encoder_forward.1} parent=0 // pred_check
    _
  $region3: #{encoder_forward.1} parent=0 // pred_check_branch
    %18 = sbr.rel (0) target = $region5
  $region4: #{encoder_forward.1} parent=0 // pred_region
    _
  $region5: #{encoder_forward.1} parent=0 // pred_fallthru
    _
  // Predicated region
  $region6: #{encoder_forward.1} parent=0 // pred_check
    _
  $region7: #{encoder_forward.1} parent=0 // pred_check_branch
    %20 = sbr.rel (0) target = $region9
  $region8: #{encoder_forward.1} parent=0 // pred_region
    _
  $region9: #{encoder_forward.1} parent=0 // pred_fallthru
    _
  // Predicated region
  $region10: #{encoder_forward.1} parent=0 // pred_check
    _
  $region11: #{encoder_forward.1} parent=0 // pred_check_branch
    %22 = sbr.rel (0) target = $region13
  $region12: #{encoder_forward.1} parent=0 // pred_region
    _
  $region13: #{encoder_forward.1} parent=0 // pred_fallthru
    _
  // Predicated region
  $region14: #{encoder_forward.1} parent=0 // pred_check
    _
  $region15: #{encoder_forward.1} parent=0 // pred_check_branch
    %24 = sbr.rel (0) target = $region17
  $region16: #{encoder_forward.1} parent=0 // pred_region
    _
  $region17: #{encoder_forward.1} parent=0 // pred_fallthru
    _
  // Predicated region
  $region18: #{encoder_forward.1} parent=0 // pred_check
    _
  $region19: #{encoder_forward.1} parent=0 // pred_check_branch
    %26 = sbr.rel (0) target = $region21
  $region20: #{encoder_forward.1} parent=0 // pred_region
    _
  $region21: #{encoder_forward.1} parent=0 // pred_fallthru
    _
  %v27 = vld [vmem:[%s1] sm:$0xff]
  %v28 = vld [vmem:[%s1 + $0x8] sm:$0xff]
  %v29 = vld [vmem:[%s1 + $0x10] sm:$0xff]
  %v30 = vld [vmem:[%s1 + $0x18] sm:$0xff]
  %v31 = vld [vmem:[%s1 + $0x20] sm:$0xff]
  %v32 = vld [vmem:[%s1 + $0x28] sm:$0xff]
  %v33 = vld [vmem:[%s1 + $0x30] sm:$0xff]
  %v34 = vld [vmem:[%s1 + $0x38] sm:$0xff]
  %v35 = vld [vmem:[%s2] sm:$0xff]
  %v36 = vld [vmem:[%s2 + $0x8] sm:$0xff]
  %v37 = vld [vmem:[%s2 + $0x10] sm:$0xff]
  %v38 = vld [vmem:[%s2 + $0x18] sm:$0xff]
  %v39 = vld [vmem:[%s3] sm:$0x1]
  %v41 = vlaneseq
  %v42 = vshrl.u32 %v41, 7
  %v43 = vsub.s32 0, %v42
  %v44 = vrot.slane %v39, %v43
  %vm46 = vcmask 261120
  %v48 = vsel %vm46, %v27, 0
  %v51 = vsel %vm46, %v28, 0
  %v54 = vsel %vm46, %v29, 0
  %v57 = vsel %vm46, %v30, 0
  %v60 = vsel %vm46, %v31, 0
  %v63 = vsel %vm46, %v32, 0
  %v66 = vsel %vm46, %v33, 0
  %v69 = vsel %vm46, %v34, 0
  %71 = vmatprep.subr.mxu0 0.0
  %72 = vmatpush1.msra.mxu0 %v35
  %73 = vmatprep.subr.mxu0 0.0
  %74 = vmatpush1.msra.mxu0 %v36
  %75 = vmatprep.subr.mxu0 0.0
  %76 = vmatpush1.msra.mxu0 %v37
  %77 = vmatprep.subr.mxu0 0.0
  %78 = vmatpush1.msra.mxu0 %v38
  %79 = vmatprep.subr.mxu0 0.0
  %80 = vmatpush1.msra.mxu0 0.0
  %81 = vmatprep.subr.mxu0 0.0
  %82 = vmatpush1.msra.mxu0 0.0
  %83 = vmatprep.subr.mxu0 0.0
  %84 = vmatpush1.msra.mxu0 0.0
  %85 = vmatprep.subr.mxu0 0.0
  %86 = vmatpush1.msra.mxu0 0.0
  %87 = vmatprep.subr.mxu0 0.0
  %88 = vmatpush1.msra.mxu0 0.0
  %89 = vmatprep.subr.mxu0 0.0
  %90 = vmatpush1.msra.mxu0 0.0
  %91 = vmatprep.subr.mxu0 0.0
  %92 = vmatpush1.msra.mxu0 0.0
  %93 = vmatprep.subr.mxu0 0.0
  %94 = vmatpush1.msra.mxu0 0.0
  %95 = vmatprep.subr.mxu0 0.0
  %96 = vmatpush1.msra.mxu0 0.0
  %97 = vmatprep.subr.mxu0 0.0
  %98 = vmatpush1.msra.mxu0 0.0
  %99 = vmatprep.subr.mxu0 0.0
  %100 = vmatpush1.msra.mxu0 0.0
  %101 = vmatprep.subr.mxu0 0.0
  %102 = vmatpush1.msra.mxu0 0.0
  %103 = vmatprep.subr.mxu0 0.0
  %104 = vmatpush1.msra.mxu0 0.0
  %105 = vmatprep.subr.mxu0 0.0
  %106 = vmatpush1.msra.mxu0 0.0
  %107 = vmatprep.subr.mxu0 0.0
  %108 = vmatpush1.msra.mxu0 0.0
  %109 = vmatprep.subr.mxu0 0.0
  %110 = vmatpush1.msra.mxu0 0.0
  %111 = vmatprep.subr.mxu0 0.0
  %112 = vmatpush1.msra.mxu0 0.0
  %113 = vmatprep.subr.mxu0 0.0
  %114 = vmatpush1.msra.mxu0 0.0
  %115 = vmatprep.subr.mxu0 0.0
  %116 = vmatpush1.msra.mxu0 0.0
  %117 = vmatprep.subr.mxu0 0.0
  %118 = vmatpush1.msra.mxu0 0.0
  %119 = vmatprep.subr.mxu0 0.0
  %120 = vmatpush1.msra.mxu0 0.0
  %121 = vmatprep.subr.mxu0 0.0
  %122 = vmatpush1.msra.mxu0 0.0
  %123 = vmatprep.subr.mxu0 0.0
  %124 = vmatpush1.msra.mxu0 0.0
  %125 = vmatprep.subr.mxu0 0.0
  %126 = vmatpush1.msra.mxu0 0.0
  %127 = vmatprep.subr.mxu0 0.0
  %128 = vmatpush1.msra.mxu0 0.0
  %129 = vmatprep.subr.mxu0 0.0
  %130 = vmatpush1.msra.mxu0 0.0
  %131 = vmatprep.subr.mxu0 0.0
  %132 = vmatpush1.msra.mxu0 0.0
  %133 = vmatprep.subr.mxu0 0.0
  %134 = vmatpush1.msra.mxu0 0.0
  %135 = vmatprep.mubr.f32.mxu0 0.0
  %136 = vmatmul.mubr.f32.gmra.mrb[0].mxu0 %v48
  %v137 = vpop.f32.mrb[0].mxu0
  %v138 = vadd.f32 %v44, %v137
  %v139 = vpop.f32.mrb[0].mxu0
  %140 = vmatprep.mubr.f32.mxu0 0.0
  %141 = vmatmul.mubr.f32.gmra.mrb[0].mxu0 %v51
  %v142 = vpop.f32.mrb[0].mxu0
  %v143 = vadd.f32 %v44, %v142
  %v144 = vpop.f32.mrb[0].mxu0
  %145 = vmatprep.mubr.f32.mxu0 0.0
  %146 = vmatmul.mubr.f32.gmra.mrb[0].mxu0 %v54
  %v147 = vpop.f32.mrb[0].mxu0
  %v148 = vadd.f32 %v44, %v147
  %v149 = vpop.f32.mrb[0].mxu0
  %150 = vmatprep.mubr.f32.mxu0 0.0
  %151 = vmatmul.mubr.f32.gmra.mrb[0].mxu0 %v57
  %v152 = vpop.f32.mrb[0].mxu0
  %v153 = vadd.f32 %v44, %v152
  %v154 = vpop.f32.mrb[0].mxu0
  %155 = vmatprep.mubr.f32.mxu0 0.0
  %156 = vmatmul.mubr.f32.gmra.mrb[0].mxu0 %v60
  %v157 = vpop.f32.mrb[0].mxu0
  %v158 = vadd.f32 %v44, %v157
  %v159 = vpop.f32.mrb[0].mxu0
  %160 = vmatprep.mubr.f32.mxu0 0.0
  %161 = vmatmul.mubr.f32.gmra.mrb[0].mxu0 %v63
  %v162 = vpop.f32.mrb[0].mxu0
  %v163 = vadd.f32 %v44, %v162
  %v164 = vpop.f32.mrb[0].mxu0
  %165 = vmatprep.mubr.f32.mxu0 0.0
  %166 = vmatmul.mubr.f32.gmra.mrb[0].mxu0 %v66
  %v167 = vpop.f32.mrb[0].mxu0
  %v168 = vadd.f32 %v44, %v167
  %v169 = vpop.f32.mrb[0].mxu0
  %170 = vmatprep.mubr.f32.mxu0 0.0
  %171 = vmatmul.mubr.f32.gmra.mrb[0].mxu0 %v69
  %v172 = vpop.f32.mrb[0].mxu0
  %v173 = vadd.f32 %v44, %v172
  %v174 = vpop.f32.mrb[0].mxu0
  %175 = vdwg.mxu0
  %176 = vst [vmem:[#allocation2] sm:$0xff] %v138
  %177 = vst [vmem:[#allocation2 + $0x8] sm:$0xff] %v143
  %178 = vst [vmem:[#allocation2 + $0x10] sm:$0xff] %v148
  %179 = vst [vmem:[#allocation2 + $0x18] sm:$0xff] %v153
  %180 = vst [vmem:[#allocation2 + $0x20] sm:$0xff] %v158
  %181 = vst [vmem:[#allocation2 + $0x28] sm:$0xff] %v163
  %182 = vst [vmem:[#allocation2 + $0x30] sm:$0xff] %v168
  %183 = vst [vmem:[#allocation2 + $0x38] sm:$0xff] %v173
  %v184 = vld [vmem:[%s4] sm:$0xff]
  %v185 = vld [vmem:[%s4 + $0x8] sm:$0xff]
  %v186 = vld [vmem:[%s4 + $0x10] sm:$0xff]
  %v187 = vld [vmem:[%s4 + $0x18] sm:$0xff]
  %v188 = vld [vmem:[%s4 + $0x20] sm:$0xff]
  %v189 = vld [vmem:[%s4 + $0x28] sm:$0xff]
  %v190 = vld [vmem:[%s4 + $0x30] sm:$0xff]
  %v191 = vld [vmem:[%s4 + $0x38] sm:$0xff]
  %v192 = vld [vmem:[%s4 + $0x40] sm:$0xff]
  %v193 = vld [vmem:[%s4 + $0x48] sm:$0xff]
  %v194 = vld [vmem:[%s4 + $0x50] sm:$0xff]
  %v195 = vld [vmem:[%s4 + $0x58] sm:$0xff]
  %v196 = vld [vmem:[%s4 + $0x60] sm:$0xff]
  %v197 = vld [vmem:[%s4 + $0x68] sm:$0xff]
  %v198 = vld [vmem:[%s4 + $0x70] sm:$0xff]
  %v199 = vld [vmem:[%s4 + $0x78] sm:$0xff]
  %v200 = vld [vmem:[%s5] sm:$0x1]
  %s201 = sld [smem:[#allocation4]]
  %s202 = scalar_lea.vmem [#allocation2], %s201
  %v203 = vld [vmem:[%s202] sm:$0x1]
  %s204 = sld [smem:[#allocation4 + $0x1]]
  %s205 = scalar_lea.vmem [#allocation2], %s204
  %v206 = vld [vmem:[%s205] sm:$0x1]
  %v208 = vrot.slane %v206, 7
  %vm210 = vcmask 1040384
  %v211 = vsel %vm210, %v203, %v208
  %v212 = vadd.f32 %v211, 0.0
  %v213 = vxor.u32 %v212, 2147483648
  %v214 = vmul.f32 %v213, 1.442695
  %v215 = vpow.pop %v214
  %v216 = vadd.f32 %v215, 1.0
  %v217 = vrcp.pop %v216
  %v218 = vmul.f32 1.0, %v217
  %v219 = vtanh.pop %v212
  %v220 = vmul.f32 %v218, 0.0
  %222 = vrot.lane.b32.xlu0 %v219, 64
  %v223 = vpop.permute.xlu0 %222
  %v225 = vmul.f32 %v218, %v223
  %227 = vrot.lane.b32.xlu0 %v225, 32
  %v228 = vpop.permute.xlu0 %227
  %v230 = vadd.f32 %v220, %v228
  %v231 = vtanh.pop %v230
  %233 = vrot.lane.b32.xlu0 %v231, 64
  %v234 = vpop.permute.xlu0 %233
  %v236 = vmul.f32 %v218, %v234
  %238 = vrot.lane.b32.xlu0 %v236, 32
  %v239 = vpop.permute.xlu0 %238
  %v241 = vsel %vm46, %v239, 0.0
  %vm242 = vcmask 523264
  %v244 = vsel %vm242, %v241, 0
  %246 = vmatprep.subr.mxu0 %v185
  %247 = vmatpush1.msra.mxu0 %v184
  %248 = vmatprep.subr.mxu0 %v187
  %249 = vmatpush1.msra.mxu0 %v186
  %250 = vmatprep.subr.mxu0 %v189
  %251 = vmatpush1.msra.mxu0 %v188
  %252 = vmatprep.subr.mxu0 %v191
  %253 = vmatpush1.msra.mxu0 %v190
  %254 = vmatprep.subr.mxu0 %v193
  %255 = vmatpush1.msra.mxu0 %v192
  %256 = vmatprep.subr.mxu0 %v195
  %257 = vmatpush1.msra.mxu0 %v194
  %258 = vmatprep.subr.mxu0 %v197
  %259 = vmatpush1.msra.mxu0 %v196
  %260 = vmatprep.subr.mxu0 %v199
  %261 = vmatpush1.msra.mxu0 %v198
  %262 = vmatprep.subr.mxu0 0.0
  %263 = vmatpush1.msra.mxu0 0.0
  %264 = vmatprep.subr.mxu0 0.0
  %265 = vmatpush1.msra.mxu0 0.0
  %266 = vmatprep.subr.mxu0 0.0
  %267 = vmatpush1.msra.mxu0 0.0
  %268 = vmatprep.subr.mxu0 0.0
  %269 = vmatpush1.msra.mxu0 0.0
  %270 = vmatprep.subr.mxu0 0.0
  %271 = vmatpush1.msra.mxu0 0.0
  %272 = vmatprep.subr.mxu0 0.0
  %273 = vmatpush1.msra.mxu0 0.0
  %274 = vmatprep.subr.mxu0 0.0
  %275 = vmatpush1.msra.mxu0 0.0
  %276 = vmatprep.subr.mxu0 0.0
  %277 = vmatpush1.msra.mxu0 0.0
  %278 = vmatprep.subr.mxu0 0.0
  %279 = vmatpush1.msra.mxu0 0.0
  %280 = vmatprep.subr.mxu0 0.0
  %281 = vmatpush1.msra.mxu0 0.0
  %282 = vmatprep.subr.mxu0 0.0
  %283 = vmatpush1.msra.mxu0 0.0
  %284 = vmatprep.subr.mxu0 0.0
  %285 = vmatpush1.msra.mxu0 0.0
  %286 = vmatprep.subr.mxu0 0.0
  %287 = vmatpush1.msra.mxu0 0.0
  %288 = vmatprep.subr.mxu0 0.0
  %289 = vmatpush1.msra.mxu0 0.0
  %290 = vmatprep.subr.mxu0 0.0
  %291 = vmatpush1.msra.mxu0 0.0
  %292 = vmatprep.subr.mxu0 0.0
  %293 = vmatpush1.msra.mxu0 0.0
  %294 = vmatprep.subr.mxu0 0.0
  %295 = vmatpush1.msra.mxu0 0.0
  %296 = vmatprep.subr.mxu0 0.0
  %297 = vmatpush1.msra.mxu0 0.0
  %298 = vmatprep.subr.mxu0 0.0
  %299 = vmatpush1.msra.mxu0 0.0
  %300 = vmatprep.subr.mxu0 0.0
  %301 = vmatpush1.msra.mxu0 0.0
  %302 = vmatprep.subr.mxu0 0.0
  %303 = vmatpush1.msra.mxu0 0.0
  %304 = vmatprep.subr.mxu0 0.0
  %305 = vmatpush1.msra.mxu0 0.0
  %306 = vmatprep.subr.mxu0 0.0
  %307 = vmatpush1.msra.mxu0 0.0
  %308 = vmatprep.subr.mxu0 0.0
  %309 = vmatpush1.msra.mxu0 0.0
  %310 = vmatprep.mubr.f32.mxu0 0.0
  %311 = vmatmul.mubr.f32.gmra.mrb[0].mxu0 %v244
  %v312 = vpop.f32.mrb[0].mxu0
  %v313 = vadd.f32 0.0, %v312
  %v314 = vpop.f32.mrb[0].mxu0
  %v315 = vadd.f32 0.0, %v314
  %316 = vdwg.mxu0
  %v318 = vlaneseq
  %v319 = vshrl.u32 %v318, 7
  %v320 = vsub.s32 0, %v319
  %v321 = vrot.slane %v200, %v320
  %v323 = vadd.f32 %v315, %v321
  %v324 = vxor.u32 %v323, 2147483648
  %v325 = vmul.f32 %v324, 1.442695
  %v326 = vpow.pop %v325
  %v327 = vadd.f32 %v326, 1.0
  %v328 = vrcp.pop %v327
  %v329 = vmul.f32 1.0, %v328
  %v330 = vtanh.pop %v323
  %v331 = vmul.f32 %v329, 0.0
  %333 = vrot.lane.b32.xlu0 %v330, 64
  %v334 = vpop.permute.xlu0 %333
  %v336 = vmul.f32 %v329, %v334
  %338 = vrot.lane.b32.xlu0 %v336, 32
  %v339 = vpop.permute.xlu0 %338
  %v341 = vadd.f32 %v331, %v339
  %v342 = vtanh.pop %v341
  %344 = vrot.lane.b32.xlu0 %v342, 64
  %v345 = vpop.permute.xlu0 %344
  %v347 = vmul.f32 %v329, %v345
  %s348 = sld [smem:[#allocation4 + $0x2]]
  %s349 = scalar_lea.vmem [#allocation2], %s348
  %v350 = vld [vmem:[%s349] sm:$0x1]
  %s351 = sld [smem:[#allocation4 + $0x3]]
  %s352 = scalar_lea.vmem [#allocation2], %s351
  %v353 = vld [vmem:[%s352] sm:$0x1]
  %v355 = vrot.slane %v353, 7
  %v357 = vsel %vm210, %v350, %v355
  %v358 = vadd.f32 %v357, %v313
  %v359 = vxor.u32 %v358, 2147483648
  %v360 = vmul.f32 %v359, 1.442695
  %v361 = vpow.pop %v360
  %v362 = vadd.f32 %v361, 1.0
  %v363 = vrcp.pop %v362
  %v364 = vmul.f32 1.0, %v363
  %v365 = vtanh.pop %v358
  %v366 = vmul.f32 %v364, %v230
  %368 = vrot.lane.b32.xlu0 %v365, 64
  %v369 = vpop.permute.xlu0 %368
  %v371 = vmul.f32 %v364, %v369
  %373 = vrot.lane.b32.xlu0 %v371, 32
  %v374 = vpop.permute.xlu0 %373
  %v376 = vadd.f32 %v366, %v374
  %v377 = vtanh.pop %v376
  %379 = vrot.lane.b32.xlu0 %v377, 64
  %v380 = vpop.permute.xlu0 %379
  %v382 = vmul.f32 %v364, %v380
  %384 = vrot.lane.b32.xlu0 %v382, 32
  %v385 = vpop.permute.xlu0 %384
  %388 = vrot.lane.b32.xlu0 %v347, 64
  %v389 = vpop.permute.xlu0 %388
  %v391 = vsel %vm46, %v385, %v389
  %v393 = vsel %vm242, %v391, 0
  %395 = vmatprep.subr.mxu0 %v185
  %396 = vmatpush1.msra.mxu0 %v184
  %397 = vmatprep.subr.mxu0 %v187
  %398 = vmatpush1.msra.mxu0 %v186
  %399 = vmatprep.subr.mxu0 %v189
  %400 = vmatpush1.msra.mxu0 %v188
  %401 = vmatprep.subr.mxu0 %v191
  %402 = vmatpush1.msra.mxu0 %v190
  %403 = vmatprep.subr.mxu0 %v193
  %404 = vmatpush1.msra.mxu0 %v192
  %405 = vmatprep.subr.mxu0 %v195
  %406 = vmatpush1.msra.mxu0 %v194
  %407 = vmatprep.subr.mxu0 %v197
  %408 = vmatpush1.msra.mxu0 %v196
  %409 = vmatprep.subr.mxu0 %v199
  %410 = vmatpush1.msra.mxu0 %v198
  %411 = vmatprep.subr.mxu0 0.0
  %412 = vmatpush1.msra.mxu0 0.0
  %413 = vmatprep.subr.mxu0 0.0
  %414 = vmatpush1.msra.mxu0 0.0
  %415 = vmatprep.subr.mxu0 0.0
  %416 = vmatpush1.msra.mxu0 0.0
  %417 = vmatprep.subr.mxu0 0.0
  %418 = vmatpush1.msra.mxu0 0.0
  %419 = vmatprep.subr.mxu0 0.0
  %420 = vmatpush1.msra.mxu0 0.0
  %421 = vmatprep.subr.mxu0 0.0
  %422 = vmatpush1.msra.mxu0 0.0
  %423 = vmatprep.subr.mxu0 0.0
  %424 = vmatpush1.msra.mxu0 0.0
  %425 = vmatprep.subr.mxu0 0.0
  %426 = vmatpush1.msra.mxu0 0.0
  %427 = vmatprep.subr.mxu0 0.0
  %428 = vmatpush1.msra.mxu0 0.0
  %429 = vmatprep.subr.mxu0 0.0
  %430 = vmatpush1.msra.mxu0 0.0
  %431 = vmatprep.subr.mxu0 0.0
  %432 = vmatpush1.msra.mxu0 0.0
  %433 = vmatprep.subr.mxu0 0.0
  %434 = vmatpush1.msra.mxu0 0.0
  %435 = vmatprep.subr.mxu0 0.0
  %436 = vmatpush1.msra.mxu0 0.0
  %437 = vmatprep.subr.mxu0 0.0
  %438 = vmatpush1.msra.mxu0 0.0
  %439 = vmatprep.subr.mxu0 0.0
  %440 = vmatpush1.msra.mxu0 0.0
  %441 = vmatprep.subr.mxu0 0.0
  %442 = vmatpush1.msra.mxu0 0.0
  %443 = vmatprep.subr.mxu0 0.0
  %444 = vmatpush1.msra.mxu0 0.0
  %445 = vmatprep.subr.mxu0 0.0
  %446 = vmatpush1.msra.mxu0 0.0
  %447 = vmatprep.subr.mxu0 0.0
  %448 = vmatpush1.msra.mxu0 0.0
  %449 = vmatprep.subr.mxu0 0.0
  %450 = vmatpush1.msra.mxu0 0.0
  %451 = vmatprep.subr.mxu0 0.0
  %452 = vmatpush1.msra.mxu0 0.0
  %453 = vmatprep.subr.mxu0 0.0
  %454 = vmatpush1.msra.mxu0 0.0
  %455 = vmatprep.subr.mxu0 0.0
  %456 = vmatpush1.msra.mxu0 0.0
  %457 = vmatprep.subr.mxu0 0.0
  %458 = vmatpush1.msra.mxu0 0.0
  %459 = vmatprep.mubr.f32.mxu0 0.0
  %460 = vmatmul.mubr.f32.gmra.mrb[0].mxu0 %v393
  %v461 = vpop.f32.mrb[0].mxu0
  %v462 = vadd.f32 0.0, %v461
  %v463 = vpop.f32.mrb[0].mxu0
  %v464 = vadd.f32 0.0, %v463
  %465 = vdwg.mxu0
  %v466 = vadd.f32 %v464, %v321
  %v467 = vxor.u32 %v466, 2147483648
  %v468 = vmul.f32 %v467, 1.442695
  %v469 = vpow.pop %v468
  %v470 = vadd.f32 %v469, 1.0
  %v471 = vrcp.pop %v470
  %v472 = vmul.f32 1.0, %v471
  %v473 = vtanh.pop %v466
  %v474 = vmul.f32 %v472, %v341
  %476 = vrot.lane.b32.xlu0 %v473, 64
  %v477 = vpop.permute.xlu0 %476
  %v479 = vmul.f32 %v472, %v477
  %481 = vrot.lane.b32.xlu0 %v479, 32
  %v482 = vpop.permute.xlu0 %481
  %v484 = vadd.f32 %v474, %v482
  %v485 = vtanh.pop %v484
  %487 = vrot.lane.b32.xlu0 %v485, 64
  %v488 = vpop.permute.xlu0 %487
  %v490 = vmul.f32 %v472, %v488
  %s491 = sld [smem:[#allocation4 + $0x4]]
  %s492 = scalar_lea.vmem [#allocation2], %s491
  %v493 = vld [vmem:[%s492] sm:$0x1]
  %s494 = sld [smem:[#allocation4 + $0x5]]
  %s495 = scalar_lea.vmem [#allocation2], %s494
  %v496 = vld [vmem:[%s495] sm:$0x1]
  %v498 = vrot.slane %v496, 7
  %v500 = vsel %vm210, %v493, %v498
  %v501 = vadd.f32 %v500, %v462
  %v502 = vxor.u32 %v501, 2147483648
  %v503 = vmul.f32 %v502, 1.442695
  %v504 = vpow.pop %v503
  %v505 = vadd.f32 %v504, 1.0
  %v506 = vrcp.pop %v505
  %v507 = vmul.f32 1.0, %v506
  %v508 = vtanh.pop %v501
  %v509 = vmul.f32 %v507, %v376
  %511 = vrot.lane.b32.xlu0 %v508, 64
  %v512 = vpop.permute.xlu0 %511
  %v514 = vmul.f32 %v507, %v512
  %516 = vrot.lane.b32.xlu0 %v514, 32
  %v517 = vpop.permute.xlu0 %516
  %v519 = vadd.f32 %v509, %v517
  %v520 = vtanh.pop %v519
  %522 = vrot.lane.b32.xlu0 %v520, 64
  %v523 = vpop.permute.xlu0 %522
  %v525 = vmul.f32 %v507, %v523
  %527 = vrot.lane.b32.xlu0 %v525, 32
  %v528 = vpop.permute.xlu0 %527
  %531 = vrot.lane.b32.xlu0 %v490, 64
  %v532 = vpop.permute.xlu0 %531
  %v534 = vsel %vm46, %v528, %v532
  %v536 = vsel %vm242, %v534, 0
  %538 = vmatprep.subr.mxu0 %v185
  %539 = vmatpush1.msra.mxu0 %v184
  %540 = vmatprep.subr.mxu0 %v187
  %541 = vmatpush1.msra.mxu0 %v186
  %542 = vmatprep.subr.mxu0 %v189
  %543 = vmatpush1.msra.mxu0 %v188
  %544 = vmatprep.subr.mxu0 %v191
  %545 = vmatpush1.msra.mxu0 %v190
  %546 = vmatprep.subr.mxu0 %v193
  %547 = vmatpush1.msra.mxu0 %v192
  %548 = vmatprep.subr.mxu0 %v195
  %549 = vmatpush1.msra.mxu0 %v194
  %550 = vmatprep.subr.mxu0 %v197
  %551 = vmatpush1.msra.mxu0 %v196
  %552 = vmatprep.subr.mxu0 %v199
  %553 = vmatpush1.msra.mxu0 %v198
  %554 = vmatprep.subr.mxu0 0.0
  %555 = vmatpush1.msra.mxu0 0.0
  %556 = vmatprep.subr.mxu0 0.0
  %557 = vmatpush1.msra.mxu0 0.0
  %558 = vmatprep.subr.mxu0 0.0
  %559 = vmatpush1.msra.mxu0 0.0
  %560 = vmatprep.subr.mxu0 0.0
  %561 = vmatpush1.msra.mxu0 0.0
  %562 = vmatprep.subr.mxu0 0.0
  %563 = vmatpush1.msra.mxu0 0.0
  %564 = vmatprep.subr.mxu0 0.0
  %565 = vmatpush1.msra.mxu0 0.0
  %566 = vmatprep.subr.mxu0 0.0
  %567 = vmatpush1.msra.mxu0 0.0
  %568 = vmatprep.subr.mxu0 0.0
  %569 = vmatpush1.msra.mxu0 0.0
  %570 = vmatprep.subr.mxu0 0.0
  %571 = vmatpush1.msra.mxu0 0.0
  %572 = vmatprep.subr.mxu0 0.0
  %573 = vmatpush1.msra.mxu0 0.0
  %574 = vmatprep.subr.mxu0 0.0
  %575 = vmatpush1.msra.mxu0 0.0
  %576 = vmatprep.subr.mxu0 0.0
  %577 = vmatpush1.msra.mxu0 0.0
  %578 = vmatprep.subr.mxu0 0.0
  %579 = vmatpush1.msra.mxu0 0.0
  %580 = vmatprep.subr.mxu0 0.0
  %581 = vmatpush1.msra.mxu0 0.0
  %582 = vmatprep.subr.mxu0 0.0
  %583 = vmatpush1.msra.mxu0 0.0
  %584 = vmatprep.subr.mxu0 0.0
  %585 = vmatpush1.msra.mxu0 0.0
  %586 = vmatprep.subr.mxu0 0.0
  %587 = vmatpush1.msra.mxu0 0.0
  %588 = vmatprep.subr.mxu0 0.0
  %589 = vmatpush1.msra.mxu0 0.0
  %590 = vmatprep.subr.mxu0 0.0
  %591 = vmatpush1.msra.mxu0 0.0
  %592 = vmatprep.subr.mxu0 0.0
  %593 = vmatpush1.msra.mxu0 0.0
  %594 = vmatprep.subr.mxu0 0.0
  %595 = vmatpush1.msra.mxu0 0.0
  %596 = vmatprep.subr.mxu0 0.0
  %597 = vmatpush1.msra.mxu0 0.0
  %598 = vmatprep.subr.mxu0 0.0
  %599 = vmatpush1.msra.mxu0 0.0
  %600 = vmatprep.subr.mxu0 0.0
  %601 = vmatpush1.msra.mxu0 0.0
  %602 = vmatprep.mubr.f32.mxu0 0.0
  %603 = vmatmul.mubr.f32.gmra.mrb[0].mxu0 %v536
  %v604 = vpop.f32.mrb[0].mxu0
  %v605 = vadd.f32 0.0, %v604
  %v606 = vpop.f32.mrb[0].mxu0
  %v607 = vadd.f32 0.0, %v606
  %608 = vdwg.mxu0
  %v609 = vadd.f32 %v607, %v321
  %v610 = vxor.u32 %v609, 2147483648
  %v611 = vmul.f32 %v610, 1.442695
  %v612 = vpow.pop %v611
  %v613 = vadd.f32 %v612, 1.0
  %v614 = vrcp.pop %v613
  %v615 = vmul.f32 1.0, %v614
  %v616 = vtanh.pop %v609
  %v617 = vmul.f32 %v615, %v484
  %619 = vrot.lane.b32.xlu0 %v616, 64
  %v620 = vpop.permute.xlu0 %619
  %v622 = vmul.f32 %v615, %v620
  %624 = vrot.lane.b32.xlu0 %v622, 32
  %v625 = vpop.permute.xlu0 %624
  %v627 = vadd.f32 %v617, %v625
  %v628 = vtanh.pop %v627
  %630 = vrot.lane.b32.xlu0 %v628, 64
  %v631 = vpop.permute.xlu0 %630
  %v633 = vmul.f32 %v615, %v631
  %s634 = sld [smem:[#allocation4 + $0x6]]
  %s635 = scalar_lea.vmem [#allocation2], %s634
  %v636 = vld [vmem:[%s635] sm:$0x1]
  %s637 = sld [smem:[#allocation4 + $0x7]]
  %s638 = scalar_lea.vmem [#allocation2], %s637
  %v639 = vld [vmem:[%s638] sm:$0x1]
  %v641 = vrot.slane %v639, 7
  %v643 = vsel %vm210, %v636, %v641
  %v644 = vadd.f32 %v643, %v605
  %v645 = vxor.u32 %v644, 2147483648
  %v646 = vmul.f32 %v645, 1.442695
  %v647 = vpow.pop %v646
  %v648 = vadd.f32 %v647, 1.0
  %v649 = vrcp.pop %v648
  %v650 = vmul.f32 1.0, %v649
  %v651 = vtanh.pop %v644
  %v652 = vmul.f32 %v650, %v519
  %654 = vrot.lane.b32.xlu0 %v651, 64
  %v655 = vpop.permute.xlu0 %654
  %v657 = vmul.f32 %v650, %v655
  %659 = vrot.lane.b32.xlu0 %v657, 32
  %v660 = vpop.permute.xlu0 %659
  %v662 = vadd.f32 %v652, %v660
  %v663 = vtanh.pop %v662
  %665 = vrot.lane.b32.xlu0 %v663, 64
  %v666 = vpop.permute.xlu0 %665
  %v668 = vmul.f32 %v650, %v666
  %670 = vrot.lane.b32.xlu0 %v668, 32
  %v671 = vpop.permute.xlu0 %670
  %674 = vrot.lane.b32.xlu0 %v633, 64
  %v675 = vpop.permute.xlu0 %674
  %v677 = vsel %vm46, %v671, %v675
  %v679 = vsel %vm242, %v677, 0
  %681 = vmatprep.subr.mxu0 %v185
  %682 = vmatpush1.msra.mxu0 %v184
  %683 = vmatprep.subr.mxu0 %v187
  %684 = vmatpush1.msra.mxu0 %v186
  %685 = vmatprep.subr.mxu0 %v189
  %686 = vmatpush1.msra.mxu0 %v188
  %687 = vmatprep.subr.mxu0 %v191
  %688 = vmatpush1.msra.mxu0 %v190
  %689 = vmatprep.subr.mxu0 %v193
  %690 = vmatpush1.msra.mxu0 %v192
  %691 = vmatprep.subr.mxu0 %v195
  %692 = vmatpush1.msra.mxu0 %v194
  %693 = vmatprep.subr.mxu0 %v197
  %694 = vmatpush1.msra.mxu0 %v196
  %695 = vmatprep.subr.mxu0 %v199
  %696 = vmatpush1.msra.mxu0 %v198
  %697 = vmatprep.subr.mxu0 0.0
  %698 = vmatpush1.msra.mxu0 0.0
  %699 = vmatprep.subr.mxu0 0.0
  %700 = vmatpush1.msra.mxu0 0.0
  %701 = vmatprep.subr.mxu0 0.0
  %702 = vmatpush1.msra.mxu0 0.0
  %703 = vmatprep.subr.mxu0 0.0
  %704 = vmatpush1.msra.mxu0 0.0
  %705 = vmatprep.subr.mxu0 0.0
  %706 = vmatpush1.msra.mxu0 0.0
  %707 = vmatprep.subr.mxu0 0.0
  %708 = vmatpush1.msra.mxu0 0.0
  %709 = vmatprep.subr.mxu0 0.0
  %710 = vmatpush1.msra.mxu0 0.0
  %711 = vmatprep.subr.mxu0 0.0
  %712 = vmatpush1.msra.mxu0 0.0
  %713 = vmatprep.subr.mxu0 0.0
  %714 = vmatpush1.msra.mxu0 0.0
  %715 = vmatprep.subr.mxu0 0.0
  %716 = vmatpush1.msra.mxu0 0.0
  %717 = vmatprep.subr.mxu0 0.0
  %718 = vmatpush1.msra.mxu0 0.0
  %719 = vmatprep.subr.mxu0 0.0
  %720 = vmatpush1.msra.mxu0 0.0
  %721 = vmatprep.subr.mxu0 0.0
  %722 = vmatpush1.msra.mxu0 0.0
  %723 = vmatprep.subr.mxu0 0.0
  %724 = vmatpush1.msra.mxu0 0.0
  %725 = vmatprep.subr.mxu0 0.0
  %726 = vmatpush1.msra.mxu0 0.0
  %727 = vmatprep.subr.mxu0 0.0
  %728 = vmatpush1.msra.mxu0 0.0
  %729 = vmatprep.subr.mxu0 0.0
  %730 = vmatpush1.msra.mxu0 0.0
  %731 = vmatprep.subr.mxu0 0.0
  %732 = vmatpush1.msra.mxu0 0.0
  %733 = vmatprep.subr.mxu0 0.0
  %734 = vmatpush1.msra.mxu0 0.0
  %735 = vmatprep.subr.mxu0 0.0
  %736 = vmatpush1.msra.mxu0 0.0
  %737 = vmatprep.subr.mxu0 0.0
  %738 = vmatpush1.msra.mxu0 0.0
  %739 = vmatprep.subr.mxu0 0.0
  %740 = vmatpush1.msra.mxu0 0.0
  %741 = vmatprep.subr.mxu0 0.0
  %742 = vmatpush1.msra.mxu0 0.0
  %743 = vmatprep.subr.mxu0 0.0
  %744 = vmatpush1.msra.mxu0 0.0
  %745 = vmatprep.mubr.f32.mxu0 0.0
  %746 = vmatmul.mubr.f32.gmra.mrb[0].mxu0 %v679
  %v747 = vpop.f32.mrb[0].mxu0
  %v748 = vadd.f32 0.0, %v747
  %v749 = vpop.f32.mrb[0].mxu0
  %v750 = vadd.f32 0.0, %v749
  %751 = vdwg.mxu0
  %v752 = vadd.f32 %v750, %v321
  %v753 = vxor.u32 %v752, 2147483648
  %v754 = vmul.f32 %v753, 1.442695
  %v755 = vpow.pop %v754
  %v756 = vadd.f32 %v755, 1.0
  %v757 = vrcp.pop %v756
  %v758 = vmul.f32 1.0, %v757
  %v759 = vtanh.pop %v752
  %v760 = vmul.f32 %v758, %v627
  %762 = vrot.lane.b32.xlu0 %v759, 64
  %v763 = vpop.permute.xlu0 %762
  %v765 = vmul.f32 %v758, %v763
  %767 = vrot.lane.b32.xlu0 %v765, 32
  %v768 = vpop.permute.xlu0 %767
  %v770 = vadd.f32 %v760, %v768
  %v771 = vtanh.pop %v770
  %773 = vrot.lane.b32.xlu0 %v771, 64
  %v774 = vpop.permute.xlu0 %773
  %v776 = vmul.f32 %v758, %v774
  %s777 = sld [smem:[#allocation4 + $0x8]]
  %s778 = scalar_lea.vmem [#allocation2], %s777
  %v779 = vld [vmem:[%s778] sm:$0x1]
  %s780 = sld [smem:[#allocation4 + $0x9]]
  %s781 = scalar_lea.vmem [#allocation2], %s780
  %v782 = vld [vmem:[%s781] sm:$0x1]
  %v784 = vrot.slane %v782, 7
  %v786 = vsel %vm210, %v779, %v784
  %v787 = vadd.f32 %v786, %v748
  %v788 = vxor.u32 %v787, 2147483648
  %v789 = vmul.f32 %v788, 1.442695
  %v790 = vpow.pop %v789
  %v791 = vadd.f32 %v790, 1.0
  %v792 = vrcp.pop %v791
  %v793 = vmul.f32 1.0, %v792
  %v794 = vtanh.pop %v787
  %v795 = vmul.f32 %v793, %v662
  %797 = vrot.lane.b32.xlu0 %v794, 64
  %v798 = vpop.permute.xlu0 %797
  %v800 = vmul.f32 %v793, %v798
  %802 = vrot.lane.b32.xlu0 %v800, 32
  %v803 = vpop.permute.xlu0 %802
  %v805 = vadd.f32 %v795, %v803
  %v806 = vtanh.pop %v805
  %808 = vrot.lane.b32.xlu0 %v806, 64
  %v809 = vpop.permute.xlu0 %808
  %v811 = vmul.f32 %v793, %v809
  %813 = vrot.lane.b32.xlu0 %v811, 32
  %v814 = vpop.permute.xlu0 %813
  %817 = vrot.lane.b32.xlu0 %v776, 64
  %v818 = vpop.permute.xlu0 %817
  %v820 = vsel %vm46, %v814, %v818
  %v822 = vsel %vm242, %v820, 0
  %824 = vmatprep.subr.mxu0 %v185
  %825 = vmatpush1.msra.mxu0 %v184
  %826 = vmatprep.subr.mxu0 %v187
  %827 = vmatpush1.msra.mxu0 %v186
  %828 = vmatprep.subr.mxu0 %v189
  %829 = vmatpush1.msra.mxu0 %v188
  %830 = vmatprep.subr.mxu0 %v191
  %831 = vmatpush1.msra.mxu0 %v190
  %832 = vmatprep.subr.mxu0 %v193
  %833 = vmatpush1.msra.mxu0 %v192
  %834 = vmatprep.subr.mxu0 %v195
  %835 = vmatpush1.msra.mxu0 %v194
  %836 = vmatprep.subr.mxu0 %v197
  %837 = vmatpush1.msra.mxu0 %v196
  %838 = vmatprep.subr.mxu0 %v199
  %839 = vmatpush1.msra.mxu0 %v198
  %840 = vmatprep.subr.mxu0 0.0
  %841 = vmatpush1.msra.mxu0 0.0
  %842 = vmatprep.subr.mxu0 0.0
  %843 = vmatpush1.msra.mxu0 0.0
  %844 = vmatprep.subr.mxu0 0.0
  %845 = vmatpush1.msra.mxu0 0.0
  %846 = vmatprep.subr.mxu0 0.0
  %847 = vmatpush1.msra.mxu0 0.0
  %848 = vmatprep.subr.mxu0 0.0
  %849 = vmatpush1.msra.mxu0 0.0
  %850 = vmatprep.subr.mxu0 0.0
  %851 = vmatpush1.msra.mxu0 0.0
  %852 = vmatprep.subr.mxu0 0.0
  %853 = vmatpush1.msra.mxu0 0.0
  %854 = vmatprep.subr.mxu0 0.0
  %855 = vmatpush1.msra.mxu0 0.0
  %856 = vmatprep.subr.mxu0 0.0
  %857 = vmatpush1.msra.mxu0 0.0
  %858 = vmatprep.subr.mxu0 0.0
  %859 = vmatpush1.msra.mxu0 0.0
  %860 = vmatprep.subr.mxu0 0.0
  %861 = vmatpush1.msra.mxu0 0.0
  %862 = vmatprep.subr.mxu0 0.0
  %863 = vmatpush1.msra.mxu0 0.0
  %864 = vmatprep.subr.mxu0 0.0
  %865 = vmatpush1.msra.mxu0 0.0
  %866 = vmatprep.subr.mxu0 0.0
  %867 = vmatpush1.msra.mxu0 0.0
  %868 = vmatprep.subr.mxu0 0.0
  %869 = vmatpush1.msra.mxu0 0.0
  %870 = vmatprep.subr.mxu0 0.0
  %871 = vmatpush1.msra.mxu0 0.0
  %872 = vmatprep.subr.mxu0 0.0
  %873 = vmatpush1.msra.mxu0 0.0
  %874 = vmatprep.subr.mxu0 0.0
  %875 = vmatpush1.msra.mxu0 0.0
  %876 = vmatprep.subr.mxu0 0.0
  %877 = vmatpush1.msra.mxu0 0.0
  %878 = vmatprep.subr.mxu0 0.0
  %879 = vmatpush1.msra.mxu0 0.0
  %880 = vmatprep.subr.mxu0 0.0
  %881 = vmatpush1.msra.mxu0 0.0
  %882 = vmatprep.subr.mxu0 0.0
  %883 = vmatpush1.msra.mxu0 0.0
  %884 = vmatprep.subr.mxu0 0.0
  %885 = vmatpush1.msra.mxu0 0.0
  %886 = vmatprep.subr.mxu0 0.0
  %887 = vmatpush1.msra.mxu0 0.0
  %888 = vmatprep.mubr.f32.mxu0 0.0
  %889 = vmatmul.mubr.f32.gmra.mrb[0].mxu0 %v822
  %v890 = vpop.f32.mrb[0].mxu0
  %v891 = vadd.f32 0.0, %v890
  %v892 = vpop.f32.mrb[0].mxu0
  %v893 = vadd.f32 0.0, %v892
  %894 = vdwg.mxu0
  %v895 = vadd.f32 %v893, %v321
  %v896 = vxor.u32 %v895, 2147483648
  %v897 = vmul.f32 %v896, 1.442695
  %v898 = vpow.pop %v897
  %v899 = vadd.f32 %v898, 1.0
  %v900 = vrcp.pop %v899
  %v901 = vmul.f32 1.0, %v900
  %v902 = vtanh.pop %v895
  %v903 = vmul.f32 %v901, %v770
  %905 = vrot.lane.b32.xlu0 %v902, 64
  %v906 = vpop.permute.xlu0 %905
  %v908 = vmul.f32 %v901, %v906
  %910 = vrot.lane.b32.xlu0 %v908, 32
  %v911 = vpop.permute.xlu0 %910
  %v913 = vadd.f32 %v903, %v911
  %v914 = vtanh.pop %v913
  %916 = vrot.lane.b32.xlu0 %v914, 64
  %v917 = vpop.permute.xlu0 %916
  %v919 = vmul.f32 %v901, %v917
  %s920 = sld [smem:[#allocation4 + $0xa]]
  %s921 = scalar_lea.vmem [#allocation2], %s920
  %v922 = vld [vmem:[%s921] sm:$0x1]
  %s923 = sld [smem:[#allocation4 + $0xb]]
  %s924 = scalar_lea.vmem [#allocation2], %s923
  %v925 = vld [vmem:[%s924] sm:$0x1]
  %v927 = vrot.slane %v925, 7
  %v929 = vsel %vm210, %v922, %v927
  %v930 = vadd.f32 %v929, %v891
  %v931 = vxor.u32 %v930, 2147483648
  %v932 = vmul.f32 %v931, 1.442695
  %v933 = vpow.pop %v932
  %v934 = vadd.f32 %v933, 1.0
  %v935 = vrcp.pop %v934
  %v936 = vmul.f32 1.0, %v935
  %v937 = vtanh.pop %v930
  %v938 = vmul.f32 %v936, %v805
  %940 = vrot.lane.b32.xlu0 %v937, 64
  %v941 = vpop.permute.xlu0 %940
  %v943 = vmul.f32 %v936, %v941
  %945 = vrot.lane.b32.xlu0 %v943, 32
  %v946 = vpop.permute.xlu0 %945
  %v948 = vadd.f32 %v938, %v946
  %v949 = vtanh.pop %v948
  %951 = vrot.lane.b32.xlu0 %v949, 64
  %v952 = vpop.permute.xlu0 %951
  %v954 = vmul.f32 %v936, %v952
  %956 = vrot.lane.b32.xlu0 %v954, 32
  %v957 = vpop.permute.xlu0 %956
  %960 = vrot.lane.b32.xlu0 %v919, 64
  %v961 = vpop.permute.xlu0 %960
  %v963 = vsel %vm46, %v957, %v961
  %v965 = vsel %vm242, %v963, 0
  %967 = vmatprep.subr.mxu0 %v185
  %968 = vmatpush1.msra.mxu0 %v184
  %969 = vmatprep.subr.mxu0 %v187
  %970 = vmatpush1.msra.mxu0 %v186
  %971 = vmatprep.subr.mxu0 %v189
  %972 = vmatpush1.msra.mxu0 %v188
  %973 = vmatprep.subr.mxu0 %v191
  %974 = vmatpush1.msra.mxu0 %v190
  %975 = vmatprep.subr.mxu0 %v193
  %976 = vmatpush1.msra.mxu0 %v192
  %977 = vmatprep.subr.mxu0 %v195
  %978 = vmatpush1.msra.mxu0 %v194
  %979 = vmatprep.subr.mxu0 %v197
  %980 = vmatpush1.msra.mxu0 %v196
  %981 = vmatprep.subr.mxu0 %v199
  %982 = vmatpush1.msra.mxu0 %v198
  %983 = vmatprep.subr.mxu0 0.0
  %984 = vmatpush1.msra.mxu0 0.0
  %985 = vmatprep.subr.mxu0 0.0
  %986 = vmatpush1.msra.mxu0 0.0
  %987 = vmatprep.subr.mxu0 0.0
  %988 = vmatpush1.msra.mxu0 0.0
  %989 = vmatprep.subr.mxu0 0.0
  %990 = vmatpush1.msra.mxu0 0.0
  %991 = vmatprep.subr.mxu0 0.0
  %992 = vmatpush1.msra.mxu0 0.0
  %993 = vmatprep.subr.mxu0 0.0
  %994 = vmatpush1.msra.mxu0 0.0
  %995 = vmatprep.subr.mxu0 0.0
  %996 = vmatpush1.msra.mxu0 0.0
  %997 = vmatprep.subr.mxu0 0.0
  %998 = vmatpush1.msra.mxu0 0.0
  %999 = vmatprep.subr.mxu0 0.0
  %1000 = vmatpush1.msra.mxu0 0.0
  %1001 = vmatprep.subr.mxu0 0.0
  %1002 = vmatpush1.msra.mxu0 0.0
  %1003 = vmatprep.subr.mxu0 0.0
  %1004 = vmatpush1.msra.mxu0 0.0
  %1005 = vmatprep.subr.mxu0 0.0
  %1006 = vmatpush1.msra.mxu0 0.0
  %1007 = vmatprep.subr.mxu0 0.0
  %1008 = vmatpush1.msra.mxu0 0.0
  %1009 = vmatprep.subr.mxu0 0.0
  %1010 = vmatpush1.msra.mxu0 0.0
  %1011 = vmatprep.subr.mxu0 0.0
  %1012 = vmatpush1.msra.mxu0 0.0
  %1013 = vmatprep.subr.mxu0 0.0
  %1014 = vmatpush1.msra.mxu0 0.0
  %1015 = vmatprep.subr.mxu0 0.0
  %1016 = vmatpush1.msra.mxu0 0.0
  %1017 = vmatprep.subr.mxu0 0.0
  %1018 = vmatpush1.msra.mxu0 0.0
  %1019 = vmatprep.subr.mxu0 0.0
  %1020 = vmatpush1.msra.mxu0 0.0
  %1021 = vmatprep.subr.mxu0 0.0
  %1022 = vmatpush1.msra.mxu0 0.0
  %1023 = vmatprep.subr.mxu0 0.0
  %1024 = vmatpush1.msra.mxu0 0.0
  %1025 = vmatprep.subr.mxu0 0.0
  %1026 = vmatpush1.msra.mxu0 0.0
  %1027 = vmatprep.subr.mxu0 0.0
  %1028 = vmatpush1.msra.mxu0 0.0
  %1029 = vmatprep.subr.mxu0 0.0
  %1030 = vmatpush1.msra.mxu0 0.0
  %1031 = vmatprep.mubr.f32.mxu0 0.0
  %1032 = vmatmul.mubr.f32.gmra.mrb[0].mxu0 %v965
  %v1033 = vpop.f32.mrb[0].mxu0
  %v1034 = vadd.f32 0.0, %v1033
  %v1035 = vpop.f32.mrb[0].mxu0
  %v1036 = vadd.f32 0.0, %v1035
  %1037 = vdwg.mxu0
  %v1038 = vadd.f32 %v1036, %v321
  %v1039 = vxor.u32 %v1038, 2147483648
  %v1040 = vmul.f32 %v1039, 1.442695
  %v1041 = vpow.pop %v1040
  %v1042 = vadd.f32 %v1041, 1.0
  %v1043 = vrcp.pop %v1042
  %v1044 = vmul.f32 1.0, %v1043
  %v1045 = vtanh.pop %v1038
  %v1046 = vmul.f32 %v1044, %v913
  %1048 = vrot.lane.b32.xlu0 %v1045, 64
  %v1049 = vpop.permute.xlu0 %1048
  %v1051 = vmul.f32 %v1044, %v1049
  %1053 = vrot.lane.b32.xlu0 %v1051, 32
  %v1054 = vpop.permute.xlu0 %1053
  %v1056 = vadd.f32 %v1046, %v1054
  %v1057 = vtanh.pop %v1056
  %1059 = vrot.lane.b32.xlu0 %v1057, 64
  %v1060 = vpop.permute.xlu0 %1059
  %v1062 = vmul.f32 %v1044, %v1060
  %s1063 = sld [smem:[#allocation4 + $0xc]]
  %s1064 = scalar_lea.vmem [#allocation2], %s1063
  %v1065 = vld [vmem:[%s1064] sm:$0x1]
  %s1066 = sld [smem:[#allocation4 + $0xd]]
  %s1067 = scalar_lea.vmem [#allocation2], %s1066
  %v1068 = vld [vmem:[%s1067] sm:$0x1]
  %v1070 = vrot.slane %v1068, 7
  %v1072 = vsel %vm210, %v1065, %v1070
  %v1073 = vadd.f32 %v1072, %v1034
  %v1074 = vxor.u32 %v1073, 2147483648
  %v1075 = vmul.f32 %v1074, 1.442695
  %v1076 = vpow.pop %v1075
  %v1077 = vadd.f32 %v1076, 1.0
  %v1078 = vrcp.pop %v1077
  %v1079 = vmul.f32 1.0, %v1078
  %v1080 = vtanh.pop %v1073
  %v1081 = vmul.f32 %v1079, %v948
  %1083 = vrot.lane.b32.xlu0 %v1080, 64
  %v1084 = vpop.permute.xlu0 %1083
  %v1086 = vmul.f32 %v1079, %v1084
  %1088 = vrot.lane.b32.xlu0 %v1086, 32
  %v1089 = vpop.permute.xlu0 %1088
  %v1091 = vadd.f32 %v1081, %v1089
  %v1092 = vtanh.pop %v1091
  %1094 = vrot.lane.b32.xlu0 %v1092, 64
  %v1095 = vpop.permute.xlu0 %1094
  %v1097 = vmul.f32 %v1079, %v1095
  %1099 = vrot.lane.b32.xlu0 %v1097, 32
  %v1100 = vpop.permute.xlu0 %1099
  %1103 = vrot.lane.b32.xlu0 %v1062, 64
  %v1104 = vpop.permute.xlu0 %1103
  %v1106 = vsel %vm46, %v1100, %v1104
  %v1108 = vsel %vm242, %v1106, 0
  %1110 = vmatprep.subr.mxu0 %v185
  %1111 = vmatpush1.msra.mxu0 %v184
  %1112 = vmatprep.subr.mxu0 %v187
  %1113 = vmatpush1.msra.mxu0 %v186
  %1114 = vmatprep.subr.mxu0 %v189
  %1115 = vmatpush1.msra.mxu0 %v188
  %1116 = vmatprep.subr.mxu0 %v191
  %1117 = vmatpush1.msra.mxu0 %v190
  %1118 = vmatprep.subr.mxu0 %v193
  %1119 = vmatpush1.msra.mxu0 %v192
  %1120 = vmatprep.subr.mxu0 %v195
  %1121 = vmatpush1.msra.mxu0 %v194
  %1122 = vmatprep.subr.mxu0 %v197
  %1123 = vmatpush1.msra.mxu0 %v196
  %1124 = vmatprep.subr.mxu0 %v199
  %1125 = vmatpush1.msra.mxu0 %v198
  %1126 = vmatprep.subr.mxu0 0.0
  %1127 = vmatpush1.msra.mxu0 0.0
  %1128 = vmatprep.subr.mxu0 0.0
  %1129 = vmatpush1.msra.mxu0 0.0
  %1130 = vmatprep.subr.mxu0 0.0
  %1131 = vmatpush1.msra.mxu0 0.0
  %1132 = vmatprep.subr.mxu0 0.0
  %1133 = vmatpush1.msra.mxu0 0.0
  %1134 = vmatprep.subr.mxu0 0.0
  %1135 = vmatpush1.msra.mxu0 0.0
  %1136 = vmatprep.subr.mxu0 0.0
  %1137 = vmatpush1.msra.mxu0 0.0
  %1138 = vmatprep.subr.mxu0 0.0
  %1139 = vmatpush1.msra.mxu0 0.0
  %1140 = vmatprep.subr.mxu0 0.0
  %1141 = vmatpush1.msra.mxu0 0.0
  %1142 = vmatprep.subr.mxu0 0.0
  %1143 = vmatpush1.msra.mxu0 0.0
  %1144 = vmatprep.subr.mxu0 0.0
  %1145 = vmatpush1.msra.mxu0 0.0
  %1146 = vmatprep.subr.mxu0 0.0
  %1147 = vmatpush1.msra.mxu0 0.0
  %1148 = vmatprep.subr.mxu0 0.0
  %1149 = vmatpush1.msra.mxu0 0.0
  %1150 = vmatprep.subr.mxu0 0.0
  %1151 = vmatpush1.msra.mxu0 0.0
  %1152 = vmatprep.subr.mxu0 0.0
  %1153 = vmatpush1.msra.mxu0 0.0
  %1154 = vmatprep.subr.mxu0 0.0
  %1155 = vmatpush1.msra.mxu0 0.0
  %1156 = vmatprep.subr.mxu0 0.0
  %1157 = vmatpush1.msra.mxu0 0.0
  %1158 = vmatprep.subr.mxu0 0.0
  %1159 = vmatpush1.msra.mxu0 0.0
  %1160 = vmatprep.subr.mxu0 0.0
  %1161 = vmatpush1.msra.mxu0 0.0
  %1162 = vmatprep.subr.mxu0 0.0
  %1163 = vmatpush1.msra.mxu0 0.0
  %1164 = vmatprep.subr.mxu0 0.0
  %1165 = vmatpush1.msra.mxu0 0.0
  %1166 = vmatprep.subr.mxu0 0.0
  %1167 = vmatpush1.msra.mxu0 0.0
  %1168 = vmatprep.subr.mxu0 0.0
  %1169 = vmatpush1.msra.mxu0 0.0
  %1170 = vmatprep.subr.mxu0 0.0
  %1171 = vmatpush1.msra.mxu0 0.0
  %1172 = vmatprep.subr.mxu0 0.0
  %1173 = vmatpush1.msra.mxu0 0.0
  %1174 = vmatprep.mubr.f32.mxu0 0.0
  %1175 = vmatmul.mubr.f32.gmra.mrb[0].mxu0 %v1108
  %v1176 = vpop.f32.mrb[0].mxu0
  %v1177 = vadd.f32 0.0, %v1176
  %v1178 = vpop.f32.mrb[0].mxu0
  %v1179 = vadd.f32 0.0, %v1178
  %1180 = vdwg.mxu0
  %v1181 = vadd.f32 %v1179, %v321
  %v1182 = vxor.u32 %v1181, 2147483648
  %v1183 = vmul.f32 %v1182, 1.442695
  %v1184 = vpow.pop %v1183
  %v1185 = vadd.f32 %v1184, 1.0
  %v1186 = vrcp.pop %v1185
  %v1187 = vmul.f32 1.0, %v1186
  %v1188 = vtanh.pop %v1181
  %v1189 = vmul.f32 %v1187, %v1056
  %1191 = vrot.lane.b32.xlu0 %v1188, 64
  %v1192 = vpop.permute.xlu0 %1191
  %v1194 = vmul.f32 %v1187, %v1192
  %1196 = vrot.lane.b32.xlu0 %v1194, 32
  %v1197 = vpop.permute.xlu0 %1196
  %v1199 = vadd.f32 %v1189, %v1197
  %v1200 = vtanh.pop %v1199
  %1202 = vrot.lane.b32.xlu0 %v1200, 64
  %v1203 = vpop.permute.xlu0 %1202
  %v1205 = vmul.f32 %v1187, %v1203
  %s1206 = sld [smem:[#allocation4 + $0xe]]
  %s1207 = scalar_lea.vmem [#allocation2], %s1206
  %v1208 = vld [vmem:[%s1207] sm:$0x1]
  %s1209 = sld [smem:[#allocation4 + $0xf]]
  %s1210 = scalar_lea.vmem [#allocation2], %s1209
  %v1211 = vld [vmem:[%s1210] sm:$0x1]
  %v1213 = vrot.slane %v1211, 7
  %v1215 = vsel %vm210, %v1208, %v1213
  %v1216 = vadd.f32 %v1215, %v1177
  %v1217 = vxor.u32 %v1216, 2147483648
  %v1218 = vmul.f32 %v1217, 1.442695
  %v1219 = vpow.pop %v1218
  %v1220 = vadd.f32 %v1219, 1.0
  %v1221 = vrcp.pop %v1220
  %v1222 = vmul.f32 1.0, %v1221
  %v1223 = vtanh.pop %v1216
  %v1224 = vmul.f32 %v1222, %v1091
  %1226 = vrot.lane.b32.xlu0 %v1223, 64
  %v1227 = vpop.permute.xlu0 %1226
  %v1229 = vmul.f32 %v1222, %v1227
  %1231 = vrot.lane.b32.xlu0 %v1229, 32
  %v1232 = vpop.permute.xlu0 %1231
  %v1234 = vadd.f32 %v1224, %v1232
  %v1235 = vtanh.pop %v1234
  %1237 = vrot.lane.b32.xlu0 %v1235, 64
  %v1238 = vpop.permute.xlu0 %1237
  %v1240 = vmul.f32 %v1222, %v1238
  %1242 = vrot.lane.b32.xlu0 %v1240, 32
  %v1243 = vpop.permute.xlu0 %1242
  %1246 = vrot.lane.b32.xlu0 %v1205, 64
  %v1247 = vpop.permute.xlu0 %1246
  %v1249 = vsel %vm46, %v1243, %v1247
  %v1251 = vsel %vm242, %v1249, 0
  %1253 = vmatprep.subr.mxu0 %v185
  %1254 = vmatpush1.msra.mxu0 %v184
  %1255 = vmatprep.subr.mxu0 %v187
  %1256 = vmatpush1.msra.mxu0 %v186
  %1257 = vmatprep.subr.mxu0 %v189
  %1258 = vmatpush1.msra.mxu0 %v188
  %1259 = vmatprep.subr.mxu0 %v191
  %1260 = vmatpush1.msra.mxu0 %v190
  %1261 = vmatprep.subr.mxu0 %v193
  %1262 = vmatpush1.msra.mxu0 %v192
  %1263 = vmatprep.subr.mxu0 %v195
  %1264 = vmatpush1.msra.mxu0 %v194
  %1265 = vmatprep.subr.mxu0 %v197
  %1266 = vmatpush1.msra.mxu0 %v196
  %1267 = vmatprep.subr.mxu0 %v199
  %1268 = vmatpush1.msra.mxu0 %v198
  %1269 = vmatprep.subr.mxu0 0.0
  %1270 = vmatpush1.msra.mxu0 0.0
  %1271 = vmatprep.subr.mxu0 0.0
  %1272 = vmatpush1.msra.mxu0 0.0
  %1273 = vmatprep.subr.mxu0 0.0
  %1274 = vmatpush1.msra.mxu0 0.0
  %1275 = vmatprep.subr.mxu0 0.0
  %1276 = vmatpush1.msra.mxu0 0.0
  %1277 = vmatprep.subr.mxu0 0.0
  %1278 = vmatpush1.msra.mxu0 0.0
  %1279 = vmatprep.subr.mxu0 0.0
  %1280 = vmatpush1.msra.mxu0 0.0
  %1281 = vmatprep.subr.mxu0 0.0
  %1282 = vmatpush1.msra.mxu0 0.0
  %1283 = vmatprep.subr.mxu0 0.0
  %1284 = vmatpush1.msra.mxu0 0.0
  %1285 = vmatprep.subr.mxu0 0.0
  %1286 = vmatpush1.msra.mxu0 0.0
  %1287 = vmatprep.subr.mxu0 0.0
  %1288 = vmatpush1.msra.mxu0 0.0
  %1289 = vmatprep.subr.mxu0 0.0
  %1290 = vmatpush1.msra.mxu0 0.0
  %1291 = vmatprep.subr.mxu0 0.0
  %1292 = vmatpush1.msra.mxu0 0.0
  %1293 = vmatprep.subr.mxu0 0.0
  %1294 = vmatpush1.msra.mxu0 0.0
  %1295 = vmatprep.subr.mxu0 0.0
  %1296 = vmatpush1.msra.mxu0 0.0
  %1297 = vmatprep.subr.mxu0 0.0
  %1298 = vmatpush1.msra.mxu0 0.0
  %1299 = vmatprep.subr.mxu0 0.0
  %1300 = vmatpush1.msra.mxu0 0.0
  %1301 = vmatprep.subr.mxu0 0.0
  %1302 = vmatpush1.msra.mxu0 0.0
  %1303 = vmatprep.subr.mxu0 0.0
  %1304 = vmatpush1.msra.mxu0 0.0
  %1305 = vmatprep.subr.mxu0 0.0
  %1306 = vmatpush1.msra.mxu0 0.0
  %1307 = vmatprep.subr.mxu0 0.0
  %1308 = vmatpush1.msra.mxu0 0.0
  %1309 = vmatprep.subr.mxu0 0.0
  %1310 = vmatpush1.msra.mxu0 0.0
  %1311 = vmatprep.subr.mxu0 0.0
  %1312 = vmatpush1.msra.mxu0 0.0
  %1313 = vmatprep.subr.mxu0 0.0
  %1314 = vmatpush1.msra.mxu0 0.0
  %1315 = vmatprep.subr.mxu0 0.0
  %1316 = vmatpush1.msra.mxu0 0.0
  %1317 = vmatprep.mubr.f32.mxu0 0.0
  %1318 = vmatmul.mubr.f32.gmra.mrb[0].mxu0 %v1251
  %v1319 = vpop.f32.mrb[0].mxu0
  %v1320 = vpop.f32.mrb[0].mxu0
  %v1321 = vadd.f32 0.0, %v1320
  %1322 = vdwg.mxu0
  %v1323 = vadd.f32 %v1321, %v321
  %v1324 = vxor.u32 %v1323, 2147483648
  %v1325 = vmul.f32 %v1324, 1.442695
  %v1326 = vpow.pop %v1325
  %v1327 = vadd.f32 %v1326, 1.0
  %v1328 = vrcp.pop %v1327
  %v1329 = vmul.f32 1.0, %v1328
  %v1330 = vtanh.pop %v1323
  %v1331 = vmul.f32 %v1329, %v1199
  %1333 = vrot.lane.b32.xlu0 %v1330, 64
  %v1334 = vpop.permute.xlu0 %1333
  %v1336 = vmul.f32 %v1329, %v1334
  %1338 = vrot.lane.b32.xlu0 %v1336, 32
  %v1339 = vpop.permute.xlu0 %1338
  %v1341 = vadd.f32 %v1331, %v1339
  %v1342 = vtanh.pop %v1341
  %1344 = vrot.lane.b32.xlu0 %v1342, 64
  %v1345 = vpop.permute.xlu0 %1344
  %v1347 = vmul.f32 %v1329, %v1345
  %1349 = vrot.lane.b32.xlu0 %v1347, 64
  %v1350 = vpop.permute.xlu0 %1349
  %1353 = vrot.lane.b32.xlu0 %v1234, 32
  %v1354 = vpop.permute.xlu0 %1353
  %1357 = vrot.lane.b32.xlu0 %v1341, 64
  %v1358 = vpop.permute.xlu0 %1357
  %v1360 = vsel %vm46, %v1243, %v1350
  %v1361 = vsel %vm242, %v1360, %v1354
  %vm1362 = vcmask 785408
  %v1363 = vsel %vm1362, %v1361, %v1358
  %vm1364 = vcmask 1041408
  %v1365 = vsel %vm1364, %v1363, 0.0
  %1366 = vst [vmem:[%s6] sm:$0xff] %v1365
  // Predicated region
  $region22: #{encoder_forward.1} parent=0 // pred_check
    _
  $region23: #{encoder_forward.1} parent=0 // pred_check_branch
    %1368 = sbr.rel (0) target = $region25
  $region24: #{encoder_forward.1} parent=0 // pred_region
    _
  $region25: #{encoder_forward.1} parent=0 // pred_fallthru
    _
  // Predicated region
  $region26: #{encoder_forward.1} parent=0 // pred_check
    _
  $region27: #{encoder_forward.1} parent=0 // pred_check_branch
    %1370 = sbr.rel (0) target = $region29
  $region28: #{encoder_forward.1} parent=0 // pred_region
    _
  $region29: #{encoder_forward.1} parent=0 // pred_fallthru
    _

</llo_original>
